<compile_context>
chip_gen: v5e
topology: v5e:2x2
jax: 0.10.0
libtpu: 0.0.40
codegen_flags: <defaults>
</compile_context>

<pallas_src>
import functools
from typing import NamedTuple

import jax
import jax.numpy as jnp
from jax.experimental import pallas as pl
from jax.experimental.pallas import tpu as pltpu


def _round_up(n: int, m: int) -> int:
    return ((n + m - 1) // m) * m


# --------------------------------------------------------------------------
# Kernel: all three layers fused, one batch tile per grid step.
# --------------------------------------------------------------------------
def encoder_kernel(x_ref,
                   w1_ref, b1_ref,
                   w2_ref, b2_ref,
                   wh_ref, bh_ref,
                   out_ref):
    # Cast the activation tile to the matmul dtype in-kernel (VPU),
    # so the wrapper never writes a bf16 copy of x to HBM.
    x = x_ref[...].astype(w1_ref.dtype)                               # (TB, d_pad)

    # fc1 + relu   (MXU matmul, f32 accumulation; bias/ReLU in f32 on the VPU)
    h1 = jnp.dot(x, w1_ref[...], preferred_element_type=jnp.float32)
    h1 = jnp.maximum(h1 + b1_ref[...], 0.0)                           # (TB, 512)

    # fc2 + relu
    h2 = jnp.dot(h1.astype(w2_ref.dtype), w2_ref[...],
                 preferred_element_type=jnp.float32)
    h2 = jnp.maximum(h2 + b2_ref[...], 0.0)                           # (TB, 256)

    # fused head: [fc_mu | fc_logvar], zero-padded to lane-dense n_head
    out = jnp.dot(h2.astype(wh_ref.dtype), wh_ref[...],
                  preferred_element_type=jnp.float32) + bh_ref[...]
    out_ref[...] = out.astype(out_ref.dtype)                          # (TB, n_head)


# --------------------------------------------------------------------------
# One-time parameter preparation (hoisted out of the per-call forward).
# --------------------------------------------------------------------------
class PreparedEncoder(NamedTuple):
    w1: jax.Array   # (d_pad, 512)   compute dtype, fc1 K zero-padded to 128-multiple
    b1: jax.Array   # (1, 512)       f32
    w2: jax.Array   # (512, 256)     compute dtype
    b2: jax.Array   # (1, 256)       f32
    wh: jax.Array   # (256, n_head)  compute dtype, [fc_mu | fc_logvar] zero-padded
    bh: jax.Array   # (1, n_head)    f32
    latent_dim: int


def prepare_params(params, *, use_bf16=True) -> PreparedEncoder:
    """Fuse / pad / cast the weights ONCE (not per forward call).

    `params` is (w1, b1, w2, b2, wmu, bmu, wlv, blv) with weights stored
    [in, out] (transposed vs. PyTorch nn.Linear) and biases (1, out).
    use_bf16=True is the production setting (full-rate MXU on v5e/v6e/v7x);
    use_bf16=False is a correctness-only mode.
    """
    w1, b1, w2, b2, wmu, bmu, wlv, blv = params
    D, H1 = w1.shape
    H2 = w2.shape[1]
    L = wmu.shape[1]
    compute_dtype = jnp.bfloat16 if use_bf16 else jnp.float32

    # fc1: pad the contraction dim (image_dim) to a multiple of 128.
    d_pad = _round_up(D, 128)
    w1_p = jnp.pad(w1, ((0, d_pad - D), (0, 0))).astype(compute_dtype)

    # Head: concat fc_mu | fc_logvar, pad N to a lane-dense multiple of 128
    # (128 already — do NOT pad further, fc1 dominates MXU time).
    n_head = _round_up(2 * L, 128)
    wh = jnp.pad(jnp.concatenate([wmu, wlv], axis=1),
                 ((0, 0), (0, n_head - 2 * L))).astype(compute_dtype)
    bh = jnp.pad(jnp.concatenate([bmu, blv], axis=1),
                 ((0, 0), (0, n_head - 2 * L))).astype(jnp.float32)

    return PreparedEncoder(
        w1=w1_p, b1=b1.astype(jnp.float32),
        w2=w2.astype(compute_dtype), b2=b2.astype(jnp.float32),
        wh=wh, bh=bh, latent_dim=int(L))


def _pick_batch_tile(B: int) -> int:
    """Workload-sized batch tile (sublane-aligned).

    Small B: split into two tiles (keeps both v7x TensorCores busy, near-zero
    padding). Large B: 512/1024-row tiles to amortize per-grid-step overhead
    while keeping >= 2 parallel tiles.
    """
    if B >= 2048:
        return 1024
    if B >= 1024:
        return 512
    if B <= 8:
        return 8
    return _round_up((B + 1) // 2, 8)


def _resident(shape):
    """Whole-array block, constant index map -> DMA'd once, resident in VMEM.
    Single-buffered (no revolving buffer needed for a constant block)."""
    try:
        return pl.BlockSpec(shape, lambda i: (0, 0), pipeline_mode=pl.Buffered(1))
    except Exception:  # older Pallas without pipeline_mode / Buffered(1)
        return pl.BlockSpec(shape, lambda i: (0, 0))


# --------------------------------------------------------------------------
# Forward
# --------------------------------------------------------------------------
@functools.partial(jax.jit, static_argnames=("latent_dim", "batch_tile"))
def _encoder_forward_impl(x, w1, b1, w2, b2, wh, bh, *, latent_dim, batch_tile):
    B, D = x.shape
    d_pad, H1 = w1.shape
    H2, n_head = wh.shape
    assert w2.shape == (H1, H2)
    L = latent_dim

    # Single fused pad of the activation (rows to tile multiple, cols to d_pad).
    # x stays f32; the kernel casts after the load.
    b_pad = _round_up(max(B, 1), batch_tile)
    pad_r, pad_c = b_pad - B, d_pad - D
    if pad_r or pad_c:
        x = jnp.pad(x, ((0, pad_r), (0, pad_c)))

    grid = (b_pad // batch_tile,)

    in_specs = [
        pl.BlockSpec((batch_tile, d_pad), lambda i: (i, 0)),   # x tile (streamed)
        _resident((d_pad, H1)), _resident((1, H1)),            # fc1
        _resident((H1, H2)), _resident((1, H2)),               # fc2
        _resident((H2, n_head)), _resident((1, n_head)),       # fused head
    ]
    out_specs = pl.BlockSpec((batch_tile, n_head), lambda i: (i, 0))

    w_item = jnp.dtype(w1.dtype).itemsize
    weight_bytes = (d_pad * H1 + H1 * H2 + H2 * n_head) * w_item
    bias_bytes = (H1 + H2 + n_head) * 4

    flops = 2 * b_pad * (d_pad * H1 + H1 * H2 + H2 * n_head)
    bytes_accessed = (b_pad * d_pad * 4            # x (f32, read in-kernel)
                      + weight_bytes + bias_bytes  # resident params (read once)
                      + b_pad * n_head * 4)        # fused output
    cost = pl.CostEstimate(flops=flops, transcendentals=0,
                           bytes_accessed=bytes_accessed)

    # Right-sized VMEM limit from the actual footprint (+ compiler headroom).
    vmem_bytes = (2 * batch_tile * d_pad * 4        # x tile, double-buffered
                  + 2 * batch_tile * n_head * 4     # out tile, double-buffered
                  + 2 * (weight_bytes + bias_bytes)  # params (<= 2 buffers)
                  + batch_tile * (H1 + H2) * 4)     # live f32 intermediates
    vmem_limit = min(max(int(vmem_bytes * 1.25) + (2 << 20), 8 << 20), 64 << 20)

    fused = pl.pallas_call(
        encoder_kernel,
        out_shape=jax.ShapeDtypeStruct((b_pad, n_head), jnp.float32),
        grid_spec=pltpu.PrefetchScalarGridSpec(
            num_scalar_prefetch=0,
            grid=grid,
            in_specs=in_specs,
            out_specs=out_specs,
        ),
        compiler_params=pltpu.CompilerParams(
            dimension_semantics=("parallel",),   # batch tiles shard across TCs (v7x)
            vmem_limit_bytes=vmem_limit,
        ),
        cost_estimate=cost,
    )(x, w1, b1, w2, b2, wh, bh)

    return fused[:B, :L], fused[:B, L:2 * L]


def encoder_forward(x, prepared: PreparedEncoder, *, batch_tile=None):
    """x: [B, image_dim] float32. Returns (mu, logvar), each [B, latent_dim]."""
    B = x.shape[0]
    if batch_tile is None:
        batch_tile = _pick_batch_tile(B)
    return _encoder_forward_impl(
        x, prepared.w1, prepared.b1, prepared.w2, prepared.b2,
        prepared.wh, prepared.bh,
        latent_dim=prepared.latent_dim, batch_tile=batch_tile)


# --------------------------------------------------------------------------
# Reference + synthetic params
# --------------------------------------------------------------------------
def init_params(key, image_dim, latent_dim):
    """Deterministic synthetic params, stored as [in, out] (transposed vs.
    PyTorch nn.Linear's [out, in]); biases as (1, out)."""
    dims = [(image_dim, 512), (512, 256), (256, latent_dim), (256, latent_dim)]
    params = []
    for i, (din, dout) in enumerate(dims):
        kw, kb = jax.random.split(jax.random.fold_in(key, i))
        bound = 1.0 / (din ** 0.5)  # nn.Linear default init range
        w = jax.random.uniform(kw, (din, dout), jnp.float32, -bound, bound)
        b = jax.random.uniform(kb, (1, dout), jnp.float32, -bound, bound)
        params += [w, b]
    return tuple(params)


def encoder_reference(x, params, compute_dtype=jnp.float32):
    """Pure-JAX reference with the same precision policy as the kernel."""
    w1, b1, w2, b2, wmu, bmu, wlv, blv = params

    def dense(a, w, b):
        return jnp.dot(a.astype(compute_dtype), w.astype(compute_dtype),
                       preferred_element_type=jnp.float32) + b

    h = jax.nn.relu(dense(x, w1, b1))
    h = jax.nn.relu(dense(h, w2, b2))
    return dense(h, wmu, bmu), dense(h, wlv, blv)


if __name__ == "__main__":
    key = jax.random.PRNGKey(0)
    B, image_dim, latent_dim = 64, 784, 20   # MNIST-like flattened images

    kx, kp = jax.random.split(key)
    x = jax.random.normal(kx, (B, image_dim), jnp.float32)
    params = init_params(kp, image_dim, latent_dim)

    # ---- f32 path (correctness-only mode, exact semantics) ----
    prep_f32 = prepare_params(params, use_bf16=False)
    mu, logvar = encoder_forward(x, prep_f32)
    jax.block_until_ready((mu, logvar))
    assert mu.shape == (B, latent_dim) and logvar.shape == (B, latent_dim)
    mu_ref, lv_ref = encoder_reference(x, params, jnp.float32)
    assert jnp.allclose(mu, mu_ref, atol=1e-4, rtol=1e-4)
    assert jnp.allclose(logvar, lv_ref, atol=1e-4, rtol=1e-4)

    # ---- bf16-matmul path (production default); B=64 -> tile=32, grid=2 ----
    prep_bf16 = prepare_params(params, use_bf16=True)
    mu16, lv16 = encoder_forward(x, prep_bf16)
    jax.block_until_ready((mu16, lv16))
    mu_ref16, lv_ref16 = encoder_reference(x, params, jnp.bfloat16)
    assert jnp.allclose(mu16, mu_ref16, atol=5e-3, rtol=5e-3)
    assert jnp.allclose(lv16, lv_ref16, atol=5e-3, rtol=5e-3)

    print("KERNEL_OK")
</pallas_src>

<mosaic_0001>
module attributes {stable_mosaic.version = 11 : i64} {
  func.func @encoder_kernel(%arg0: i32, %arg1: memref<32x896xf32, #tpu.memory_space<vmem>>, %arg2: memref<896x512xf32, #tpu.memory_space<vmem>>, %arg3: memref<1x512xf32, #tpu.memory_space<vmem>>, %arg4: memref<512x256xf32, #tpu.memory_space<vmem>>, %arg5: memref<1x256xf32, #tpu.memory_space<vmem>>, %arg6: memref<256x128xf32, #tpu.memory_space<vmem>>, %arg7: memref<1x128xf32, #tpu.memory_space<vmem>>, %arg8: memref<32x128xf32, #tpu.memory_space<vmem>>) attributes {dimension_semantics = [#tpu.dimension_semantics<parallel>], iteration_bounds = array<i64: 2>, scalar_prefetch = 0 : i64, scratch_operands = 0 : i64, tpu.core_type = #tpu.core_type<tc>, window_params = [{transform_indices = @transform_0, window_bounds = array<i64: 32, 896>}, {pipeline_mode = #tpu.pipeline_mode<synchronous>, transform_indices = @transform_1, window_bounds = array<i64: 896, 512>}, {pipeline_mode = #tpu.pipeline_mode<synchronous>, transform_indices = @transform_2, window_bounds = array<i64: 1, 512>}, {pipeline_mode = #tpu.pipeline_mode<synchronous>, transform_indices = @transform_3, window_bounds = array<i64: 512, 256>}, {pipeline_mode = #tpu.pipeline_mode<synchronous>, transform_indices = @transform_4, window_bounds = array<i64: 1, 256>}, {pipeline_mode = #tpu.pipeline_mode<synchronous>, transform_indices = @transform_5, window_bounds = array<i64: 256, 128>}, {pipeline_mode = #tpu.pipeline_mode<synchronous>, transform_indices = @transform_6, window_bounds = array<i64: 1, 128>}, {transform_indices = @transform_7, window_bounds = array<i64: 32, 128>}]} {
    %c0 = arith.constant 0 : index
    %c0_0 = arith.constant 0 : index
    %0 = vector.load %arg1[%c0, %c0_0] : memref<32x896xf32, #tpu.memory_space<vmem>>, vector<32x896xf32>
    %c0_1 = arith.constant 0 : index
    %c0_2 = arith.constant 0 : index
    %1 = vector.load %arg2[%c0_1, %c0_2] : memref<896x512xf32, #tpu.memory_space<vmem>>, vector<896x512xf32>
    %cst = arith.constant dense<0.000000e+00> : vector<32x512xf32>
    %2 = tpu.matmul %0, %1, %cst {dimension_numbers = #tpu.dot_dimension_numbers<[1], [0], [0], [1], [0, 0, 1, 1], [], []>} : vector<32x896xf32>, vector<896x512xf32>, vector<32x512xf32> -> vector<32x512xf32>
    %c0_3 = arith.constant 0 : index
    %c0_4 = arith.constant 0 : index
    %3 = vector.load %arg3[%c0_3, %c0_4] : memref<1x512xf32, #tpu.memory_space<vmem>>, vector<1x512xf32>
    %4 = vector.broadcast %3 : vector<1x512xf32> to vector<32x512xf32>
    %5 = arith.addf %2, %4 : vector<32x512xf32>
    %cst_5 = arith.constant 0.000000e+00 : f32
    %6 = vector.broadcast %cst_5 : f32 to vector<32x512xf32>
    %7 = arith.maximumf %5, %6 : vector<32x512xf32>
    %c0_6 = arith.constant 0 : index
    %c0_7 = arith.constant 0 : index
    %8 = vector.load %arg4[%c0_6, %c0_7] : memref<512x256xf32, #tpu.memory_space<vmem>>, vector<512x256xf32>
    %cst_8 = arith.constant dense<0.000000e+00> : vector<32x256xf32>
    %9 = tpu.matmul %7, %8, %cst_8 {dimension_numbers = #tpu.dot_dimension_numbers<[1], [0], [0], [1], [0, 0, 1, 1], [], []>} : vector<32x512xf32>, vector<512x256xf32>, vector<32x256xf32> -> vector<32x256xf32>
    %c0_9 = arith.constant 0 : index
    %c0_10 = arith.constant 0 : index
    %10 = vector.load %arg5[%c0_9, %c0_10] : memref<1x256xf32, #tpu.memory_space<vmem>>, vector<1x256xf32>
    %11 = vector.broadcast %10 : vector<1x256xf32> to vector<32x256xf32>
    %12 = arith.addf %9, %11 : vector<32x256xf32>
    %cst_11 = arith.constant 0.000000e+00 : f32
    %13 = vector.broadcast %cst_11 : f32 to vector<32x256xf32>
    %14 = arith.maximumf %12, %13 : vector<32x256xf32>
    %c0_12 = arith.constant 0 : index
    %c0_13 = arith.constant 0 : index
    %15 = vector.load %arg6[%c0_12, %c0_13] : memref<256x128xf32, #tpu.memory_space<vmem>>, vector<256x128xf32>
    %cst_14 = arith.constant dense<0.000000e+00> : vector<32x128xf32>
    %16 = tpu.matmul %14, %15, %cst_14 {dimension_numbers = #tpu.dot_dimension_numbers<[1], [0], [0], [1], [0, 0, 1, 1], [], []>} : vector<32x256xf32>, vector<256x128xf32>, vector<32x128xf32> -> vector<32x128xf32>
    %c0_15 = arith.constant 0 : index
    %c0_16 = arith.constant 0 : index
    %17 = vector.load %arg7[%c0_15, %c0_16] : memref<1x128xf32, #tpu.memory_space<vmem>>, vector<1x128xf32>
    %18 = vector.broadcast %17 : vector<1x128xf32> to vector<32x128xf32>
    %19 = arith.addf %16, %18 : vector<32x128xf32>
    %c0_17 = arith.constant 0 : index
    %c0_18 = arith.constant 0 : index
    %20 = vector.load %arg8[%c0_17, %c0_18] : memref<32x128xf32, #tpu.memory_space<vmem>>, vector<32x128xf32>
    tpu.vector_store %arg8[%c0_17, %c0_18], %19 {strides = array<i32>} : memref<32x128xf32, #tpu.memory_space<vmem>>, vector<32x128xf32>,
    return
  }
  func.func @transform_0(%arg0: i32) -> (i32, i32) {
    %c0_i32 = arith.constant 0 : i32
    %c0_i32_0 = arith.constant 0 : i32
    return %arg0, %c0_i32 : i32, i32
  }
  func.func @transform_1(%arg0: i32) -> (i32, i32) {
    %c0_i32 = arith.constant 0 : i32
    %c0_i32_0 = arith.constant 0 : i32
    %c0_i32_1 = arith.constant 0 : i32
    return %c0_i32, %c0_i32_0 : i32, i32
  }
  func.func @transform_2(%arg0: i32) -> (i32, i32) {
    %c0_i32 = arith.constant 0 : i32
    %c0_i32_0 = arith.constant 0 : i32
    %c0_i32_1 = arith.constant 0 : i32
    return %c0_i32, %c0_i32_0 : i32, i32
  }
  func.func @transform_3(%arg0: i32) -> (i32, i32) {
    %c0_i32 = arith.constant 0 : i32
    %c0_i32_0 = arith.constant 0 : i32
    %c0_i32_1 = arith.constant 0 : i32
    return %c0_i32, %c0_i32_0 : i32, i32
  }
  func.func @transform_4(%arg0: i32) -> (i32, i32) {
    %c0_i32 = arith.constant 0 : i32
    %c0_i32_0 = arith.constant 0 : i32
    %c0_i32_1 = arith.constant 0 : i32
    return %c0_i32, %c0_i32_0 : i32, i32
  }
  func.func @transform_5(%arg0: i32) -> (i32, i32) {
    %c0_i32 = arith.constant 0 : i32
    %c0_i32_0 = arith.constant 0 : i32
    %c0_i32_1 = arith.constant 0 : i32
    return %c0_i32, %c0_i32_0 : i32, i32
  }
  func.func @transform_6(%arg0: i32) -> (i32, i32) {
    %c0_i32 = arith.constant 0 : i32
    %c0_i32_0 = arith.constant 0 : i32
    %c0_i32_1 = arith.constant 0 : i32
    return %c0_i32, %c0_i32_0 : i32, i32
  }
  func.func @transform_7(%arg0: i32) -> (i32, i32) {
    %c0_i32 = arith.constant 0 : i32
    %c0_i32_0 = arith.constant 0 : i32
    return %arg0, %c0_i32 : i32, i32
  }
}

</mosaic_0001>

<llo_original>
// kernel: _encoder_forward_impl.1
$region0: #{_encoder_forward_impl.1}
  #allocation0 [shape = 'u32[]', space=smem, size = 0x4, offset = 0x4, fixed_abs, tag = 'smem constant byte address 0x4 - core index']
  #allocation1 [shape = 'u32[72,128]{1,0:T(1,128)}', space=vmem, size = 0x9000, scoped, tag = 'internal scratch']
  %s0 = inlined_call_operand.vmem [shape: f32[64,896], index: 0, kind: input, shape index: {}]
  %s1 = inlined_call_operand.hbm [shape: f32[896,512], index: 1, kind: input, shape index: {}]
  %s2 = inlined_call_operand.hbm [shape: f32[1,512], index: 2, kind: input, shape index: {}]
  %s3 = inlined_call_operand.hbm [shape: f32[512,256], index: 3, kind: input, shape index: {}]
  %s4 = inlined_call_operand.hbm [shape: f32[1,256], index: 4, kind: input, shape index: {}]
  %s5 = inlined_call_operand.hbm [shape: f32[256,128], index: 5, kind: input, shape index: {}]
  %s6 = inlined_call_operand.hbm [shape: f32[1,128], index: 6, kind: input, shape index: {}]
  %s7 = inlined_call_operand.vmem [shape: f32[64,128], index: 7, kind: output, shape index: {}]
  %s8 = sld [smem:[#allocation0]]
  $region85: #{_encoder_forward_impl.1} parent=0
    _
  %s10 = ssub.s32 1, %s8
  %s11 = scalar_select 0, %s10, %s8
  $region1: #{_encoder_forward_impl.1} parent=0
    #allocation2 [shape = 'u8[1835008]{0}', space=vmem, size = 0x1c0000, scoped, tag = 'input window, operand 1, single buffered']
    #allocation3 [shape = 's32[2]{0}', space=sflag, size = 0x8, scoped, tag = 'scoped memory for _encoder_forward_impl.1']
    #allocation4 [shape = 'u8[2048]{0}', space=vmem, size = 0x800, scoped, tag = 'input window, operand 2, single buffered']
    #allocation5 [shape = 's32[1]{0}', space=sflag, size = 0x4, scoped, tag = 'scoped memory for _encoder_forward_impl.1']
    #allocation6 [shape = 'u8[524288]{0}', space=vmem, size = 0x80000, scoped, tag = 'input window, operand 3, single buffered']
    #allocation7 [shape = 'u8[1024]{0}', space=vmem, size = 0x400, scoped, tag = 'input window, operand 4, single buffered']
    #allocation8 [shape = 's32[1]{0}', space=sflag, size = 0x4, scoped, tag = 'scoped memory for _encoder_forward_impl.1']
    #allocation9 [shape = 'u8[131072]{0}', space=vmem, size = 0x20000, scoped, tag = 'input window, operand 5, single buffered']
    #allocation10 [shape = 'u8[512]{0}', space=vmem, size = 0x400, scoped, tag = 'input window, operand 6, single buffered']
    #allocation11 [shape = 's32[1]{0}', space=sflag, size = 0x4, scoped, tag = 'scoped memory for _encoder_forward_impl.1']
    %12 = vsyncpa [#allocation3], 0
    %13 = vsyncpa [#allocation5], 0
    %14 = vsyncpa [#allocation8], 0
    %15 = vsyncpa [#allocation11], 0
    loop: start=0, step=1, limit=4
    $region2: #{_encoder_forward_impl.1} parent=1 // loop_pre_header
      _
    $region3: #{_encoder_forward_impl.1} parent=1 // loop_header
      %s17 = sphi 0, %s21
      %p18 = scmp.ge.s32.totalorder %s17, 4
      %s27 = sphi 0, %s29
      %s30 = sphi 0, %s27
      %s31 = sphi 0, %s30
      %s47 = sphi 0, %s31
      %s51 = sphi 0, %s51
      %s53 = sphi 0, %s51
      %s54 = sphi 0, %s53
      %s68 = sphi 0, %s54
      %s72 = sphi 0, %s72
      %s74 = sphi 0, %s72
      %s75 = sphi 0, %s74
      %s89 = sphi 0, %s75
      %s93 = sphi 0, %s93
      %s95 = sphi 0, %s93
      %s96 = sphi 0, %s95
      %s110 = sphi 0, %s96
      %s114 = sphi 0, %s114
      %s116 = sphi 0, %s114
      %s117 = sphi 0, %s116
      %s131 = sphi 0, %s117
      %s135 = sphi 0, %s135
      %s137 = sphi 0, %s135
      %s138 = sphi 0, %s137
      %s152 = sphi 0, %s138
      %s156 = sphi 0, %s156
      %s158 = sphi 0, %s156
      %s159 = sphi 0, %s158
      %s173 = sphi 0, %s159
      %s179 = sphi 0, %s181
      %s182 = sphi 0, %s179
      %s183 = sphi 0, %s182
      %s199 = sphi 0, %s183
    $region4: #{_encoder_forward_impl.1} parent=1 // loop_header_branch
      %20 = sbr.rel (%p18) target = $region8
    $region5: #{_encoder_forward_impl.1} parent=1 // loop_body
      %s22 = ssub.s32 %s17, 1
      %s23 = ssub.s32 %s17, 2
      %s24 = sadd.s32 %s17, 1
      %s25 = ssub.s32 %s17, %s24
      %p26 = scmp.eq.s32.totalorder %s25, 0
      %s28 = sadd.s32 %s27, 1
      %s29 = scalar_select %p26, %s27, %s28
      %p32 = pneg %p26
      %p33 = scmp.eq.s32.totalorder %s17, 1
      %p34 = por %p32, %p33
      %p35 = scmp.ne.s32.totalorder %s27, %s30
      %p36 = scmp.eq.s32.totalorder %s17, 0
      %p37 = por %p35, %p36
      %p38 = scmp.ne.s32.totalorder %s27, %s30
      %p39 = scmp.eq.s32.totalorder %s22, 1
      %p40 = por %p38, %p39
      %p41 = scmp.ne.s32.totalorder %s30, %s31
      %p42 = scmp.eq.s32.totalorder %s22, 0
      %p43 = por %p41, %p42
      %p44 = scmp.ne.s32.totalorder %s30, %s31
      %p45 = scmp.eq.s32.totalorder %s23, 1
      %p46 = por %p44, %p45
      %p48 = scmp.ne.s32.totalorder %s31, %s47
      %p49 = scmp.eq.s32.totalorder %s23, 0
      %p50 = por %p48, %p49
      %s52 = sadd.s32 %s51, 1
      %p55 = scmp.eq.s32.totalorder %s17, 1
      %p56 = scmp.ne.s32.totalorder %s51, %s53
      %p57 = scmp.eq.s32.totalorder %s17, 0
      %p58 = por %p56, %p57
      %p59 = scmp.ne.s32.totalorder %s51, %s53
      %p60 = scmp.eq.s32.totalorder %s22, 1
      %p61 = por %p59, %p60
      %p62 = scmp.ne.s32.totalorder %s53, %s54
      %p63 = scmp.eq.s32.totalorder %s22, 0
      %p64 = por %p62, %p63
      %p65 = scmp.ne.s32.totalorder %s53, %s54
      %p66 = scmp.eq.s32.totalorder %s23, 1
      %p67 = por %p65, %p66
      %p69 = scmp.ne.s32.totalorder %s54, %s68
      %p70 = scmp.eq.s32.totalorder %s23, 0
      %p71 = por %p69, %p70
      %s73 = sadd.s32 %s72, 1
      %p76 = scmp.eq.s32.totalorder %s17, 1
      %p77 = scmp.ne.s32.totalorder %s72, %s74
      %p78 = scmp.eq.s32.totalorder %s17, 0
      %p79 = por %p77, %p78
      %p80 = scmp.ne.s32.totalorder %s72, %s74
      %p81 = scmp.eq.s32.totalorder %s22, 1
      %p82 = por %p80, %p81
      %p83 = scmp.ne.s32.totalorder %s74, %s75
      %p84 = scmp.eq.s32.totalorder %s22, 0
      %p85 = por %p83, %p84
      %p86 = scmp.ne.s32.totalorder %s74, %s75
      %p87 = scmp.eq.s32.totalorder %s23, 1
      %p88 = por %p86, %p87
      %p90 = scmp.ne.s32.totalorder %s75, %s89
      %p91 = scmp.eq.s32.totalorder %s23, 0
      %p92 = por %p90, %p91
      %s94 = sadd.s32 %s93, 1
      %p97 = scmp.eq.s32.totalorder %s17, 1
      %p98 = scmp.ne.s32.totalorder %s93, %s95
      %p99 = scmp.eq.s32.totalorder %s17, 0
      %p100 = por %p98, %p99
      %p101 = scmp.ne.s32.totalorder %s93, %s95
      %p102 = scmp.eq.s32.totalorder %s22, 1
      %p103 = por %p101, %p102
      %p104 = scmp.ne.s32.totalorder %s95, %s96
      %p105 = scmp.eq.s32.totalorder %s22, 0
      %p106 = por %p104, %p105
      %p107 = scmp.ne.s32.totalorder %s95, %s96
      %p108 = scmp.eq.s32.totalorder %s23, 1
      %p109 = por %p107, %p108
      %p111 = scmp.ne.s32.totalorder %s96, %s110
      %p112 = scmp.eq.s32.totalorder %s23, 0
      %p113 = por %p111, %p112
      %s115 = sadd.s32 %s114, 1
      %p118 = scmp.eq.s32.totalorder %s17, 1
      %p119 = scmp.ne.s32.totalorder %s114, %s116
      %p120 = scmp.eq.s32.totalorder %s17, 0
      %p121 = por %p119, %p120
      %p122 = scmp.ne.s32.totalorder %s114, %s116
      %p123 = scmp.eq.s32.totalorder %s22, 1
      %p124 = por %p122, %p123
      %p125 = scmp.ne.s32.totalorder %s116, %s117
      %p126 = scmp.eq.s32.totalorder %s22, 0
      %p127 = por %p125, %p126
      %p128 = scmp.ne.s32.totalorder %s116, %s117
      %p129 = scmp.eq.s32.totalorder %s23, 1
      %p130 = por %p128, %p129
      %p132 = scmp.ne.s32.totalorder %s117, %s131
      %p133 = scmp.eq.s32.totalorder %s23, 0
      %p134 = por %p132, %p133
      %s136 = sadd.s32 %s135, 1
      %p139 = scmp.eq.s32.totalorder %s17, 1
      %p140 = scmp.ne.s32.totalorder %s135, %s137
      %p141 = scmp.eq.s32.totalorder %s17, 0
      %p142 = por %p140, %p141
      %p143 = scmp.ne.s32.totalorder %s135, %s137
      %p144 = scmp.eq.s32.totalorder %s22, 1
      %p145 = por %p143, %p144
      %p146 = scmp.ne.s32.totalorder %s137, %s138
      %p147 = scmp.eq.s32.totalorder %s22, 0
      %p148 = por %p146, %p147
      %p149 = scmp.ne.s32.totalorder %s137, %s138
      %p150 = scmp.eq.s32.totalorder %s23, 1
      %p151 = por %p149, %p150
      %p153 = scmp.ne.s32.totalorder %s138, %s152
      %p154 = scmp.eq.s32.totalorder %s23, 0
      %p155 = por %p153, %p154
      %s157 = sadd.s32 %s156, 1
      %p160 = scmp.eq.s32.totalorder %s17, 1
      %p161 = scmp.ne.s32.totalorder %s156, %s158
      %p162 = scmp.eq.s32.totalorder %s17, 0
      %p163 = por %p161, %p162
      %p164 = scmp.ne.s32.totalorder %s156, %s158
      %p165 = scmp.eq.s32.totalorder %s22, 1
      %p166 = por %p164, %p165
      %p167 = scmp.ne.s32.totalorder %s158, %s159
      %p168 = scmp.eq.s32.totalorder %s22, 0
      %p169 = por %p167, %p168
      %p170 = scmp.ne.s32.totalorder %s158, %s159
      %p171 = scmp.eq.s32.totalorder %s23, 1
      %p172 = por %p170, %p171
      %p174 = scmp.ne.s32.totalorder %s159, %s173
      %p175 = scmp.eq.s32.totalorder %s23, 0
      %p176 = por %p174, %p175
      %s177 = ssub.s32 %s17, %s24
      %p178 = scmp.eq.s32.totalorder %s177, 0
      %s180 = sadd.s32 %s179, 1
      %s181 = scalar_select %p178, %s179, %s180
      %p184 = pneg %p178
      %p185 = scmp.eq.s32.totalorder %s17, 1
      %p186 = por %p184, %p185
      %p187 = scmp.ne.s32.totalorder %s179, %s182
      %p188 = scmp.eq.s32.totalorder %s17, 0
      %p189 = por %p187, %p188
      %p190 = scmp.ne.s32.totalorder %s179, %s182
      %p191 = scmp.eq.s32.totalorder %s22, 1
      %p192 = por %p190, %p191
      %p193 = scmp.ne.s32.totalorder %s182, %s183
      %p194 = scmp.eq.s32.totalorder %s22, 0
      %p195 = por %p193, %p194
      %p196 = scmp.ne.s32.totalorder %s182, %s183
      %p197 = scmp.eq.s32.totalorder %s23, 1
      %p198 = por %p196, %p197
      %p200 = scmp.ne.s32.totalorder %s183, %s199
      %p201 = scmp.eq.s32.totalorder %s23, 0
      %p202 = por %p200, %p201
      %p203 = scmp.le.s32.totalorder 1, %s17
      %p204 = scmp.lt.s32.totalorder %s17, 3
      %p205 = pnand %p203, %p204
      %p206 = pneg %p205
      // Predicated region
      $region9: #{_encoder_forward_impl.1} parent=5 // pred_check
        _
      $region10: #{_encoder_forward_impl.1} parent=5 // pred_check_branch
        %208 = sbr.rel (%p205) target = $region12
      $region11: #{_encoder_forward_impl.1} parent=5 // pred_region
        %s209 = ssub.s32 %s17, 1
        // Predicated region
        $region13: #{_encoder_forward_impl.1} parent=11 // pred_check
          %p210 = pneg %p64
        $region14: #{_encoder_forward_impl.1} parent=11 // pred_check_branch
          %212 = sbr.rel (%p210) target = $region16
        $region15: #{_encoder_forward_impl.1} parent=11 // pred_region
          %214 = vsyncadd [#allocation3], 0
          %s215 = sshll.u32 %s1, 4
          %s216 = int_to_ptr.hbm [resolvable:$true] %s215
          %s217 = sshll.u32 [#allocation2], 4
          %s218 = int_to_ptr.vmem [resolvable:$true] %s217
          %223 = dma.hbm_to_vmem [thread:$0]  %s216, 57344, %s218, [#allocation3], 512, 512, 32
        $region16: #{_encoder_forward_impl.1} parent=11 // pred_fallthru
          _
        // Predicated region
        $region17: #{_encoder_forward_impl.1} parent=11 // pred_check
          %p224 = pneg %p85
        $region18: #{_encoder_forward_impl.1} parent=11 // pred_check_branch
          %226 = sbr.rel (%p224) target = $region20
        $region19: #{_encoder_forward_impl.1} parent=11 // pred_region
          %228 = vsyncadd [#allocation5], 0
          %s230 = sshll.u32 %s2, 4
          %s231 = int_to_ptr.hbm [resolvable:$true] %s230
          %s232 = sshll.u32 [#allocation4], 4
          %s233 = int_to_ptr.vmem [resolvable:$true] %s232
          %235 = dma.hbm_to_vmem [thread:$0]  %s231, 64, %s233, [#allocation5]
        $region20: #{_encoder_forward_impl.1} parent=11 // pred_fallthru
          _
        // Predicated region
        $region21: #{_encoder_forward_impl.1} parent=11 // pred_check
          %p236 = pneg %p106
        $region22: #{_encoder_forward_impl.1} parent=11 // pred_check_branch
          %238 = sbr.rel (%p236) target = $region24
        $region23: #{_encoder_forward_impl.1} parent=11 // pred_region
          %240 = vsyncadd [#allocation5], 0
          %s241 = sshll.u32 %s3, 4
          %s242 = int_to_ptr.hbm [resolvable:$true] %s241
          %s243 = sshll.u32 [#allocation6], 4
          %s244 = int_to_ptr.vmem [resolvable:$true] %s243
          %249 = dma.hbm_to_vmem [thread:$0]  %s242, 16384, %s244, [#allocation5], 256, 256, 16
        $region24: #{_encoder_forward_impl.1} parent=11 // pred_fallthru
          _
        // Predicated region
        $region25: #{_encoder_forward_impl.1} parent=11 // pred_check
          %p250 = pneg %p127
        $region26: #{_encoder_forward_impl.1} parent=11 // pred_check_branch
          %252 = sbr.rel (%p250) target = $region28
        $region27: #{_encoder_forward_impl.1} parent=11 // pred_region
          %254 = vsyncadd [#allocation8], 0
          %s256 = sshll.u32 %s4, 4
          %s257 = int_to_ptr.hbm [resolvable:$true] %s256
          %s258 = sshll.u32 [#allocation7], 4
          %s259 = int_to_ptr.vmem [resolvable:$true] %s258
          %261 = dma.hbm_to_vmem [thread:$0]  %s257, 32, %s259, [#allocation8]
        $region28: #{_encoder_forward_impl.1} parent=11 // pred_fallthru
          _
        // Predicated region
        $region29: #{_encoder_forward_impl.1} parent=11 // pred_check
          %p262 = pneg %p148
        $region30: #{_encoder_forward_impl.1} parent=11 // pred_check_branch
          %264 = sbr.rel (%p262) target = $region32
        $region31: #{_encoder_forward_impl.1} parent=11 // pred_region
          %266 = vsyncadd [#allocation8], 0
          %s267 = sshll.u32 %s5, 4
          %s268 = int_to_ptr.hbm [resolvable:$true] %s267
          %s269 = sshll.u32 [#allocation9], 4
          %s270 = int_to_ptr.vmem [resolvable:$true] %s269
          %275 = dma.hbm_to_vmem [thread:$0]  %s268, 4096, %s270, [#allocation8], 128, 128, 8
        $region32: #{_encoder_forward_impl.1} parent=11 // pred_fallthru
          _
        // Predicated region
        $region33: #{_encoder_forward_impl.1} parent=11 // pred_check
          %p276 = pneg %p169
        $region34: #{_encoder_forward_impl.1} parent=11 // pred_check_branch
          %278 = sbr.rel (%p276) target = $region36
        $region35: #{_encoder_forward_impl.1} parent=11 // pred_region
          %280 = vsyncadd [#allocation11], 0
          %s282 = sshll.u32 %s6, 4
          %s283 = int_to_ptr.hbm [resolvable:$true] %s282
          %s284 = sshll.u32 [#allocation10], 4
          %s285 = int_to_ptr.vmem [resolvable:$true] %s284
          %287 = dma.hbm_to_vmem [thread:$0]  %s283, 16, %s285, [#allocation11]
        $region36: #{_encoder_forward_impl.1} parent=11 // pred_fallthru
          _
      $region12: #{_encoder_forward_impl.1} parent=5 // pred_fallthru
        _
      %p288 = scmp.lt.s32.totalorder %s17, 2
      // Predicated region
      $region37: #{_encoder_forward_impl.1} parent=5 // pred_check
        %p289 = pneg %p288
      $region38: #{_encoder_forward_impl.1} parent=5 // pred_check_branch
        %291 = sbr.rel (%p289) target = $region40
      $region39: #{_encoder_forward_impl.1} parent=5 // pred_region
        // Predicated region
        $region41: #{_encoder_forward_impl.1} parent=39 // pred_check
          %p292 = pneg %p37
        $region42: #{_encoder_forward_impl.1} parent=39 // pred_check_branch
          %294 = sbr.rel (%p292) target = $region44
        $region43: #{_encoder_forward_impl.1} parent=39 // pred_region
          %s295 = smul.u32 4, %s17
          %p296 = scmp.lt.s32.totalorder %s295, 7
          %s297 = scalar_select %p296, %s295, 7
          %s298 = smul.addr %s297, 7
          %s299 = smul.addr %s298, 8
          %s300 = scalar_lea.vmem %s0, %s299
          %s301 = smul.u32 4, %s17
        $region44: #{_encoder_forward_impl.1} parent=39 // pred_fallthru
          _
      $region40: #{_encoder_forward_impl.1} parent=5 // pred_fallthru
        _
      %p302 = scmp.le.s32.totalorder 1, %s17
      %p303 = scmp.lt.s32.totalorder %s17, 3
      %p304 = pnand %p302, %p303
      %p305 = pneg %p304
      // Predicated region
      $region45: #{_encoder_forward_impl.1} parent=5 // pred_check
        _
      $region46: #{_encoder_forward_impl.1} parent=5 // pred_check_branch
        %307 = sbr.rel (%p304) target = $region48
      $region47: #{_encoder_forward_impl.1} parent=5 // pred_region
        %s308 = ssub.s32 %s17, 1
        // Predicated region
        $region49: #{_encoder_forward_impl.1} parent=47 // pred_check
          %p309 = pneg %p64
        $region50: #{_encoder_forward_impl.1} parent=47 // pred_check_branch
          %311 = sbr.rel (%p309) target = $region52
        $region51: #{_encoder_forward_impl.1} parent=47 // pred_region
          %313 = dma.done [#allocation3], 57344
        $region52: #{_encoder_forward_impl.1} parent=47 // pred_fallthru
          _
        // Predicated region
        $region53: #{_encoder_forward_impl.1} parent=47 // pred_check
          %p314 = pneg %p85
        $region54: #{_encoder_forward_impl.1} parent=47 // pred_check_branch
          %316 = sbr.rel (%p314) target = $region56
        $region55: #{_encoder_forward_impl.1} parent=47 // pred_region
          %318 = dma.done [#allocation5], 64
        $region56: #{_encoder_forward_impl.1} parent=47 // pred_fallthru
          _
        // Predicated region
        $region57: #{_encoder_forward_impl.1} parent=47 // pred_check
          %p319 = pneg %p106
        $region58: #{_encoder_forward_impl.1} parent=47 // pred_check_branch
          %321 = sbr.rel (%p319) target = $region60
        $region59: #{_encoder_forward_impl.1} parent=47 // pred_region
          %323 = dma.done [#allocation5], 16384
        $region60: #{_encoder_forward_impl.1} parent=47 // pred_fallthru
          _
        // Predicated region
        $region61: #{_encoder_forward_impl.1} parent=47 // pred_check
          %p324 = pneg %p127
        $region62: #{_encoder_forward_impl.1} parent=47 // pred_check_branch
          %326 = sbr.rel (%p324) target = $region64
        $region63: #{_encoder_forward_impl.1} parent=47 // pred_region
          %328 = dma.done [#allocation8], 32
        $region64: #{_encoder_forward_impl.1} parent=47 // pred_fallthru
          _
        // Predicated region
        $region65: #{_encoder_forward_impl.1} parent=47 // pred_check
          %p329 = pneg %p148
        $region66: #{_encoder_forward_impl.1} parent=47 // pred_check_branch
          %331 = sbr.rel (%p329) target = $region68
        $region67: #{_encoder_forward_impl.1} parent=47 // pred_region
          %333 = dma.done [#allocation8], 4096
        $region68: #{_encoder_forward_impl.1} parent=47 // pred_fallthru
          _
        // Predicated region
        $region69: #{_encoder_forward_impl.1} parent=47 // pred_check
          %p334 = pneg %p169
        $region70: #{_encoder_forward_impl.1} parent=47 // pred_check_branch
          %336 = sbr.rel (%p334) target = $region72
        $region71: #{_encoder_forward_impl.1} parent=47 // pred_region
          %338 = dma.done [#allocation11], 16
        $region72: #{_encoder_forward_impl.1} parent=47 // pred_fallthru
          _
        %s339 = smul.u32 4, %s22
        %p340 = scmp.lt.s32.totalorder %s339, 7
        %s341 = scalar_select %p340, %s339, 7
        %s342 = smul.addr %s341, 7
        %s343 = smul.addr %s342, 8
        %s344 = scalar_lea.vmem %s0, %s343
        %p345 = pneg %p43
        %p346 = pneg %p40
        %p347 = pneg %p64
        %p348 = pneg %p61
        %p349 = pneg %p85
        %p350 = pneg %p82
        %p351 = pneg %p106
        %p352 = pneg %p103
        %p353 = pneg %p127
        %p354 = pneg %p124
        %p355 = pneg %p148
        %p356 = pneg %p145
        %p357 = pneg %p169
        %p358 = pneg %p166
        %p359 = pneg %p195
        %p360 = pneg %p192
        %s361 = smul.u32 4, %s22
        %p362 = scmp.lt.s32.totalorder %s361, 7
        %s363 = scalar_select %p362, %s361, 7
        %s364 = smul.addr %s363, 8
        %s365 = scalar_lea.vmem %s7, %s364
        %s366 = smul.u32 4, %s22
        %p367 = scmp.lt.s32.totalorder %s366, 7
        %s368 = scalar_select %p367, %s366, 7
        %s369 = smul.addr %s368, 7
        %s370 = smul.addr %s369, 8
        %s371 = scalar_lea.vmem %s0, %s370
        %s372 = smul.u32 4, %s22
        %s373 = smul.u32 4, %s22
        %p374 = scmp.lt.s32.totalorder %s373, 7
        %s375 = scalar_select %p374, %s373, 7
        %s376 = smul.addr %s375, 8
        %s377 = scalar_lea.vmem %s7, %s376
        %s378 = smul.u32 4, %s22
        %v379 = vld [vmem:[%s371] sm:$0xff]
        %v380 = vld [vmem:[%s371 + $0x8] sm:$0xff]
        %v381 = vld [vmem:[%s371 + $0x10] sm:$0xff]
        %v382 = vld [vmem:[%s371 + $0x18] sm:$0xff]
        %v383 = vld [vmem:[%s371 + $0x20] sm:$0xff]
        %v384 = vld [vmem:[%s371 + $0x28] sm:$0xff]
        %v385 = vld [vmem:[%s371 + $0x30] sm:$0xff]
        %v386 = vld [vmem:[%s371 + $0x38] sm:$0xff]
        %v387 = vld [vmem:[%s371 + $0x40] sm:$0xff]
        %v388 = vld [vmem:[%s371 + $0x48] sm:$0xff]
        %v389 = vld [vmem:[%s371 + $0x50] sm:$0xff]
        %v390 = vld [vmem:[%s371 + $0x58] sm:$0xff]
        %v391 = vld [vmem:[%s371 + $0x60] sm:$0xff]
        %v392 = vld [vmem:[%s371 + $0x68] sm:$0xff]
        %v393 = vld [vmem:[%s371 + $0x70] sm:$0xff]
        %v394 = vld [vmem:[%s371 + $0x78] sm:$0xff]
        %v395 = vld [vmem:[%s371 + $0x80] sm:$0xff]
        %v396 = vld [vmem:[%s371 + $0x88] sm:$0xff]
        %v397 = vld [vmem:[%s371 + $0x90] sm:$0xff]
        %v398 = vld [vmem:[%s371 + $0x98] sm:$0xff]
        %v399 = vld [vmem:[%s371 + $0xa0] sm:$0xff]
        %v400 = vld [vmem:[%s371 + $0xa8] sm:$0xff]
        %v401 = vld [vmem:[%s371 + $0xb0] sm:$0xff]
        %v402 = vld [vmem:[%s371 + $0xb8] sm:$0xff]
        %v403 = vld [vmem:[%s371 + $0xc0] sm:$0xff]
        %v404 = vld [vmem:[%s371 + $0xc8] sm:$0xff]
        %v405 = vld [vmem:[%s371 + $0xd0] sm:$0xff]
        %v406 = vld [vmem:[%s371 + $0xd8] sm:$0xff]
        %v407 = vld [vmem:[#allocation2] sm:$0xff]
        %v408 = vld [vmem:[#allocation2 + $0x8] sm:$0xff]
        %v409 = vld [vmem:[#allocation2 + $0x10] sm:$0xff]
        %v410 = vld [vmem:[#allocation2 + $0x18] sm:$0xff]
        %v411 = vld [vmem:[#allocation2 + $0x20] sm:$0xff]
        %v412 = vld [vmem:[#allocation2 + $0x28] sm:$0xff]
        %v413 = vld [vmem:[#allocation2 + $0x30] sm:$0xff]
        %v414 = vld [vmem:[#allocation2 + $0x38] sm:$0xff]
        %v415 = vld [vmem:[#allocation2 + $0x40] sm:$0xff]
        %v416 = vld [vmem:[#allocation2 + $0x48] sm:$0xff]
        %v417 = vld [vmem:[#allocation2 + $0x50] sm:$0xff]
        %v418 = vld [vmem:[#allocation2 + $0x58] sm:$0xff]
        %v419 = vld [vmem:[#allocation2 + $0x60] sm:$0xff]
        %v420 = vld [vmem:[#allocation2 + $0x68] sm:$0xff]
        %v421 = vld [vmem:[#allocation2 + $0x70] sm:$0xff]
        %v422 = vld [vmem:[#allocation2 + $0x78] sm:$0xff]
        %v423 = vld [vmem:[#allocation2 + $0x80] sm:$0xff]
        %v424 = vld [vmem:[#allocation2 + $0x88] sm:$0xff]
        %v425 = vld [vmem:[#allocation2 + $0x90] sm:$0xff]
        %v426 = vld [vmem:[#allocation2 + $0x98] sm:$0xff]
        %v427 = vld [vmem:[#allocation2 + $0xa0] sm:$0xff]
        %v428 = vld [vmem:[#allocation2 + $0xa8] sm:$0xff]
        %v429 = vld [vmem:[#allocation2 + $0xb0] sm:$0xff]
        %v430 = vld [vmem:[#allocation2 + $0xb8] sm:$0xff]
        %v431 = vld [vmem:[#allocation2 + $0xc0] sm:$0xff]
        %v432 = vld [vmem:[#allocation2 + $0xc8] sm:$0xff]
        %v433 = vld [vmem:[#allocation2 + $0xd0] sm:$0xff]
        %v434 = vld [vmem:[#allocation2 + $0xd8] sm:$0xff]
        %v435 = vld [vmem:[#allocation2 + $0xe0] sm:$0xff]
        %v436 = vld [vmem:[#allocation2 + $0xe8] sm:$0xff]
        %v437 = vld [vmem:[#allocation2 + $0xf0] sm:$0xff]
        %v438 = vld [vmem:[#allocation2 + $0xf8] sm:$0xff]
        %v439 = vld [vmem:[#allocation2 + $0x100] sm:$0xff]
        %v440 = vld [vmem:[#allocation2 + $0x108] sm:$0xff]
        %v441 = vld [vmem:[#allocation2 + $0x110] sm:$0xff]
        %v442 = vld [vmem:[#allocation2 + $0x118] sm:$0xff]
        %v443 = vld [vmem:[#allocation2 + $0x120] sm:$0xff]
        %v444 = vld [vmem:[#allocation2 + $0x128] sm:$0xff]
        %v445 = vld [vmem:[#allocation2 + $0x130] sm:$0xff]
        %v446 = vld [vmem:[#allocation2 + $0x138] sm:$0xff]
        %v447 = vld [vmem:[#allocation2 + $0x140] sm:$0xff]
        %v448 = vld [vmem:[#allocation2 + $0x148] sm:$0xff]
        %v449 = vld [vmem:[#allocation2 + $0x150] sm:$0xff]
        %v450 = vld [vmem:[#allocation2 + $0x158] sm:$0xff]
        %v451 = vld [vmem:[#allocation2 + $0x160] sm:$0xff]
        %v452 = vld [vmem:[#allocation2 + $0x168] sm:$0xff]
        %v453 = vld [vmem:[#allocation2 + $0x170] sm:$0xff]
        %v454 = vld [vmem:[#allocation2 + $0x178] sm:$0xff]
        %v455 = vld [vmem:[#allocation2 + $0x180] sm:$0xff]
        %v456 = vld [vmem:[#allocation2 + $0x188] sm:$0xff]
        %v457 = vld [vmem:[#allocation2 + $0x190] sm:$0xff]
        %v458 = vld [vmem:[#allocation2 + $0x198] sm:$0xff]
        %v459 = vld [vmem:[#allocation2 + $0x1a0] sm:$0xff]
        %v460 = vld [vmem:[#allocation2 + $0x1a8] sm:$0xff]
        %v461 = vld [vmem:[#allocation2 + $0x1b0] sm:$0xff]
        %v462 = vld [vmem:[#allocation2 + $0x1b8] sm:$0xff]
        %v463 = vld [vmem:[#allocation2 + $0x1c0] sm:$0xff]
        %v464 = vld [vmem:[#allocation2 + $0x1c8] sm:$0xff]
        %v465 = vld [vmem:[#allocation2 + $0x1d0] sm:$0xff]
        %v466 = vld [vmem:[#allocation2 + $0x1d8] sm:$0xff]
        %v467 = vld [vmem:[#allocation2 + $0x1e0] sm:$0xff]
        %v468 = vld [vmem:[#allocation2 + $0x1e8] sm:$0xff]
        %v469 = vld [vmem:[#allocation2 + $0x1f0] sm:$0xff]
        %v470 = vld [vmem:[#allocation2 + $0x1f8] sm:$0xff]
        %v471 = vld [vmem:[#allocation2 + $0x200] sm:$0xff]
        %v472 = vld [vmem:[#allocation2 + $0x208] sm:$0xff]
        %v473 = vld [vmem:[#allocation2 + $0x210] sm:$0xff]
        %v474 = vld [vmem:[#allocation2 + $0x218] sm:$0xff]
        %v475 = vld [vmem:[#allocation2 + $0x220] sm:$0xff]
        %v476 = vld [vmem:[#allocation2 + $0x228] sm:$0xff]
        %v477 = vld [vmem:[#allocation2 + $0x230] sm:$0xff]
        %v478 = vld [vmem:[#allocation2 + $0x238] sm:$0xff]
        %v479 = vld [vmem:[#allocation2 + $0x240] sm:$0xff]
        %v480 = vld [vmem:[#allocation2 + $0x248] sm:$0xff]
        %v481 = vld [vmem:[#allocation2 + $0x250] sm:$0xff]
        %v482 = vld [vmem:[#allocation2 + $0x258] sm:$0xff]
        %v483 = vld [vmem:[#allocation2 + $0x260] sm:$0xff]
        %v484 = vld [vmem:[#allocation2 + $0x268] sm:$0xff]
        %v485 = vld [vmem:[#allocation2 + $0x270] sm:$0xff]
        %v486 = vld [vmem:[#allocation2 + $0x278] sm:$0xff]
        %v487 = vld [vmem:[#allocation2 + $0x280] sm:$0xff]
        %v488 = vld [vmem:[#allocation2 + $0x288] sm:$0xff]
        %v489 = vld [vmem:[#allocation2 + $0x290] sm:$0xff]
        %v490 = vld [vmem:[#allocation2 + $0x298] sm:$0xff]
        %v491 = vld [vmem:[#allocation2 + $0x2a0] sm:$0xff]
        %v492 = vld [vmem:[#allocation2 + $0x2a8] sm:$0xff]
        %v493 = vld [vmem:[#allocation2 + $0x2b0] sm:$0xff]
        %v494 = vld [vmem:[#allocation2 + $0x2b8] sm:$0xff]
        %v495 = vld [vmem:[#allocation2 + $0x2c0] sm:$0xff]
        %v496 = vld [vmem:[#allocation2 + $0x2c8] sm:$0xff]
        %v497 = vld [vmem:[#allocation2 + $0x2d0] sm:$0xff]
        %v498 = vld [vmem:[#allocation2 + $0x2d8] sm:$0xff]
        %v499 = vld [vmem:[#allocation2 + $0x2e0] sm:$0xff]
        %v500 = vld [vmem:[#allocation2 + $0x2e8] sm:$0xff]
        %v501 = vld [vmem:[#allocation2 + $0x2f0] sm:$0xff]
        %v502 = vld [vmem:[#allocation2 + $0x2f8] sm:$0xff]
        %v503 = vld [vmem:[#allocation2 + $0x300] sm:$0xff]
        %v504 = vld [vmem:[#allocation2 + $0x308] sm:$0xff]
        %v505 = vld [vmem:[#allocation2 + $0x310] sm:$0xff]
        %v506 = vld [vmem:[#allocation2 + $0x318] sm:$0xff]
        %v507 = vld [vmem:[#allocation2 + $0x320] sm:$0xff]
        %v508 = vld [vmem:[#allocation2 + $0x328] sm:$0xff]
        %v509 = vld [vmem:[#allocation2 + $0x330] sm:$0xff]
        %v510 = vld [vmem:[#allocation2 + $0x338] sm:$0xff]
        %v511 = vld [vmem:[#allocation2 + $0x340] sm:$0xff]
        %v512 = vld [vmem:[#allocation2 + $0x348] sm:$0xff]
        %v513 = vld [vmem:[#allocation2 + $0x350] sm:$0xff]
        %v514 = vld [vmem:[#allocation2 + $0x358] sm:$0xff]
        %v515 = vld [vmem:[#allocation2 + $0x360] sm:$0xff]
        %v516 = vld [vmem:[#allocation2 + $0x368] sm:$0xff]
        %v517 = vld [vmem:[#allocation2 + $0x370] sm:$0xff]
        %v518 = vld [vmem:[#allocation2 + $0x378] sm:$0xff]
        %v519 = vld [vmem:[#allocation2 + $0x380] sm:$0xff]
        %v520 = vld [vmem:[#allocation2 + $0x388] sm:$0xff]
        %v521 = vld [vmem:[#allocation2 + $0x390] sm:$0xff]
        %v522 = vld [vmem:[#allocation2 + $0x398] sm:$0xff]
        %v523 = vld [vmem:[#allocation2 + $0x3a0] sm:$0xff]
        %v524 = vld [vmem:[#allocation2 + $0x3a8] sm:$0xff]
        %v525 = vld [vmem:[#allocation2 + $0x3b0] sm:$0xff]
        %v526 = vld [vmem:[#allocation2 + $0x3b8] sm:$0xff]
        %v527 = vld [vmem:[#allocation2 + $0x3c0] sm:$0xff]
        %v528 = vld [vmem:[#allocation2 + $0x3c8] sm:$0xff]
        %v529 = vld [vmem:[#allocation2 + $0x3d0] sm:$0xff]
        %v530 = vld [vmem:[#allocation2 + $0x3d8] sm:$0xff]
        %v531 = vld [vmem:[#allocation2 + $0x3e0] sm:$0xff]
        %v532 = vld [vmem:[#allocation2 + $0x3e8] sm:$0xff]
        %v533 = vld [vmem:[#allocation2 + $0x3f0] sm:$0xff]
        %v534 = vld [vmem:[#allocation2 + $0x3f8] sm:$0xff]
        %v535 = vld [vmem:[#allocation2 + $0x400] sm:$0xff]
        %v536 = vld [vmem:[#allocation2 + $0x408] sm:$0xff]
        %v537 = vld [vmem:[#allocation2 + $0x410] sm:$0xff]
        %v538 = vld [vmem:[#allocation2 + $0x418] sm:$0xff]
        %v539 = vld [vmem:[#allocation2 + $0x420] sm:$0xff]
        %v540 = vld [vmem:[#allocation2 + $0x428] sm:$0xff]
        %v541 = vld [vmem:[#allocation2 + $0x430] sm:$0xff]
        %v542 = vld [vmem:[#allocation2 + $0x438] sm:$0xff]
        %v543 = vld [vmem:[#allocation2 + $0x440] sm:$0xff]
        %v544 = vld [vmem:[#allocation2 + $0x448] sm:$0xff]
        %v545 = vld [vmem:[#allocation2 + $0x450] sm:$0xff]
        %v546 = vld [vmem:[#allocation2 + $0x458] sm:$0xff]
        %v547 = vld [vmem:[#allocation2 + $0x460] sm:$0xff]
        %v548 = vld [vmem:[#allocation2 + $0x468] sm:$0xff]
        %v549 = vld [vmem:[#allocation2 + $0x470] sm:$0xff]
        %v550 = vld [vmem:[#allocation2 + $0x478] sm:$0xff]
        %v551 = vld [vmem:[#allocation2 + $0x480] sm:$0xff]
        %v552 = vld [vmem:[#allocation2 + $0x488] sm:$0xff]
        %v553 = vld [vmem:[#allocation2 + $0x490] sm:$0xff]
        %v554 = vld [vmem:[#allocation2 + $0x498] sm:$0xff]
        %v555 = vld [vmem:[#allocation2 + $0x4a0] sm:$0xff]
        %v556 = vld [vmem:[#allocation2 + $0x4a8] sm:$0xff]
        %v557 = vld [vmem:[#allocation2 + $0x4b0] sm:$0xff]
        %v558 = vld [vmem:[#allocation2 + $0x4b8] sm:$0xff]
        %v559 = vld [vmem:[#allocation2 + $0x4c0] sm:$0xff]
        %v560 = vld [vmem:[#allocation2 + $0x4c8] sm:$0xff]
        %v561 = vld [vmem:[#allocation2 + $0x4d0] sm:$0xff]
        %v562 = vld [vmem:[#allocation2 + $0x4d8] sm:$0xff]
        %v563 = vld [vmem:[#allocation2 + $0x4e0] sm:$0xff]
        %v564 = vld [vmem:[#allocation2 + $0x4e8] sm:$0xff]
        %v565 = vld [vmem:[#allocation2 + $0x4f0] sm:$0xff]
        %v566 = vld [vmem:[#allocation2 + $0x4f8] sm:$0xff]
        %v567 = vld [vmem:[#allocation2 + $0x500] sm:$0xff]
        %v568 = vld [vmem:[#allocation2 + $0x508] sm:$0xff]
        %v569 = vld [vmem:[#allocation2 + $0x510] sm:$0xff]
        %v570 = vld [vmem:[#allocation2 + $0x518] sm:$0xff]
        %v571 = vld [vmem:[#allocation2 + $0x520] sm:$0xff]
        %v572 = vld [vmem:[#allocation2 + $0x528] sm:$0xff]
        %v573 = vld [vmem:[#allocation2 + $0x530] sm:$0xff]
        %v574 = vld [vmem:[#allocation2 + $0x538] sm:$0xff]
        %v575 = vld [vmem:[#allocation2 + $0x540] sm:$0xff]
        %v576 = vld [vmem:[#allocation2 + $0x548] sm:$0xff]
        %v577 = vld [vmem:[#allocation2 + $0x550] sm:$0xff]
        %v578 = vld [vmem:[#allocation2 + $0x558] sm:$0xff]
        %v579 = vld [vmem:[#allocation2 + $0x560] sm:$0xff]
        %v580 = vld [vmem:[#allocation2 + $0x568] sm:$0xff]
        %v581 = vld [vmem:[#allocation2 + $0x570] sm:$0xff]
        %v582 = vld [vmem:[#allocation2 + $0x578] sm:$0xff]
        %v583 = vld [vmem:[#allocation2 + $0x580] sm:$0xff]
        %v584 = vld [vmem:[#allocation2 + $0x588] sm:$0xff]
        %v585 = vld [vmem:[#allocation2 + $0x590] sm:$0xff]
        %v586 = vld [vmem:[#allocation2 + $0x598] sm:$0xff]
        %v587 = vld [vmem:[#allocation2 + $0x5a0] sm:$0xff]
        %v588 = vld [vmem:[#allocation2 + $0x5a8] sm:$0xff]
        %v589 = vld [vmem:[#allocation2 + $0x5b0] sm:$0xff]
        %v590 = vld [vmem:[#allocation2 + $0x5b8] sm:$0xff]
        %v591 = vld [vmem:[#allocation2 + $0x5c0] sm:$0xff]
        %v592 = vld [vmem:[#allocation2 + $0x5c8] sm:$0xff]
        %v593 = vld [vmem:[#allocation2 + $0x5d0] sm:$0xff]
        %v594 = vld [vmem:[#allocation2 + $0x5d8] sm:$0xff]
        %v595 = vld [vmem:[#allocation2 + $0x5e0] sm:$0xff]
        %v596 = vld [vmem:[#allocation2 + $0x5e8] sm:$0xff]
        %v597 = vld [vmem:[#allocation2 + $0x5f0] sm:$0xff]
        %v598 = vld [vmem:[#allocation2 + $0x5f8] sm:$0xff]
        %v599 = vld [vmem:[#allocation2 + $0x600] sm:$0xff]
        %v600 = vld [vmem:[#allocation2 + $0x608] sm:$0xff]
        %v601 = vld [vmem:[#allocation2 + $0x610] sm:$0xff]
        %v602 = vld [vmem:[#allocation2 + $0x618] sm:$0xff]
        %v603 = vld [vmem:[#allocation2 + $0x620] sm:$0xff]
        %v604 = vld [vmem:[#allocation2 + $0x628] sm:$0xff]
        %v605 = vld [vmem:[#allocation2 + $0x630] sm:$0xff]
        %v606 = vld [vmem:[#allocation2 + $0x638] sm:$0xff]
        %v607 = vld [vmem:[#allocation2 + $0x640] sm:$0xff]
        %v608 = vld [vmem:[#allocation2 + $0x648] sm:$0xff]
        %v609 = vld [vmem:[#allocation2 + $0x650] sm:$0xff]
        %v610 = vld [vmem:[#allocation2 + $0x658] sm:$0xff]
        %v611 = vld [vmem:[#allocation2 + $0x660] sm:$0xff]
        %v612 = vld [vmem:[#allocation2 + $0x668] sm:$0xff]
        %v613 = vld [vmem:[#allocation2 + $0x670] sm:$0xff]
        %v614 = vld [vmem:[#allocation2 + $0x678] sm:$0xff]
        %v615 = vld [vmem:[#allocation2 + $0x680] sm:$0xff]
        %v616 = vld [vmem:[#allocation2 + $0x688] sm:$0xff]
        %v617 = vld [vmem:[#allocation2 + $0x690] sm:$0xff]
        %v618 = vld [vmem:[#allocation2 + $0x698] sm:$0xff]
        %v619 = vld [vmem:[#allocation2 + $0x6a0] sm:$0xff]
        %v620 = vld [vmem:[#allocation2 + $0x6a8] sm:$0xff]
        %v621 = vld [vmem:[#allocation2 + $0x6b0] sm:$0xff]
        %v622 = vld [vmem:[#allocation2 + $0x6b8] sm:$0xff]
        %v623 = vld [vmem:[#allocation2 + $0x6c0] sm:$0xff]
        %v624 = vld [vmem:[#allocation2 + $0x6c8] sm:$0xff]
        %v625 = vld [vmem:[#allocation2 + $0x6d0] sm:$0xff]
        %v626 = vld [vmem:[#allocation2 + $0x6d8] sm:$0xff]
        %v627 = vld [vmem:[#allocation2 + $0x6e0] sm:$0xff]
        %v628 = vld [vmem:[#allocation2 + $0x6e8] sm:$0xff]
        %v629 = vld [vmem:[#allocation2 + $0x6f0] sm:$0xff]
        %v630 = vld [vmem:[#allocation2 + $0x6f8] sm:$0xff]
        %v631 = vld [vmem:[#allocation2 + $0x700] sm:$0xff]
        %v632 = vld [vmem:[#allocation2 + $0x708] sm:$0xff]
        %v633 = vld [vmem:[#allocation2 + $0x710] sm:$0xff]
        %v634 = vld [vmem:[#allocation2 + $0x718] sm:$0xff]
        %v635 = vld [vmem:[#allocation2 + $0x720] sm:$0xff]
        %v636 = vld [vmem:[#allocation2 + $0x728] sm:$0xff]
        %v637 = vld [vmem:[#allocation2 + $0x730] sm:$0xff]
        %v638 = vld [vmem:[#allocation2 + $0x738] sm:$0xff]
        %v639 = vld [vmem:[#allocation2 + $0x740] sm:$0xff]
        %v640 = vld [vmem:[#allocation2 + $0x748] sm:$0xff]
        %v641 = vld [vmem:[#allocation2 + $0x750] sm:$0xff]
        %v642 = vld [vmem:[#allocation2 + $0x758] sm:$0xff]
        %v643 = vld [vmem:[#allocation2 + $0x760] sm:$0xff]
        %v644 = vld [vmem:[#allocation2 + $0x768] sm:$0xff]
        %v645 = vld [vmem:[#allocation2 + $0x770] sm:$0xff]
        %v646 = vld [vmem:[#allocation2 + $0x778] sm:$0xff]
        %v647 = vld [vmem:[#allocation2 + $0x780] sm:$0xff]
        %v648 = vld [vmem:[#allocation2 + $0x788] sm:$0xff]
        %v649 = vld [vmem:[#allocation2 + $0x790] sm:$0xff]
        %v650 = vld [vmem:[#allocation2 + $0x798] sm:$0xff]
        %v651 = vld [vmem:[#allocation2 + $0x7a0] sm:$0xff]
        %v652 = vld [vmem:[#allocation2 + $0x7a8] sm:$0xff]
        %v653 = vld [vmem:[#allocation2 + $0x7b0] sm:$0xff]
        %v654 = vld [vmem:[#allocation2 + $0x7b8] sm:$0xff]
        %v655 = vld [vmem:[#allocation2 + $0x7c0] sm:$0xff]
        %v656 = vld [vmem:[#allocation2 + $0x7c8] sm:$0xff]
        %v657 = vld [vmem:[#allocation2 + $0x7d0] sm:$0xff]
        %v658 = vld [vmem:[#allocation2 + $0x7d8] sm:$0xff]
        %v659 = vld [vmem:[#allocation2 + $0x7e0] sm:$0xff]
        %v660 = vld [vmem:[#allocation2 + $0x7e8] sm:$0xff]
        %v661 = vld [vmem:[#allocation2 + $0x7f0] sm:$0xff]
        %v662 = vld [vmem:[#allocation2 + $0x7f8] sm:$0xff]
        %v663 = vld [vmem:[#allocation2 + $0x800] sm:$0xff]
        %v664 = vld [vmem:[#allocation2 + $0x808] sm:$0xff]
        %v665 = vld [vmem:[#allocation2 + $0x810] sm:$0xff]
        %v666 = vld [vmem:[#allocation2 + $0x818] sm:$0xff]
        %v667 = vld [vmem:[#allocation2 + $0x820] sm:$0xff]
        %v668 = vld [vmem:[#allocation2 + $0x828] sm:$0xff]
        %v669 = vld [vmem:[#allocation2 + $0x830] sm:$0xff]
        %v670 = vld [vmem:[#allocation2 + $0x838] sm:$0xff]
        %v671 = vld [vmem:[#allocation2 + $0x840] sm:$0xff]
        %v672 = vld [vmem:[#allocation2 + $0x848] sm:$0xff]
        %v673 = vld [vmem:[#allocation2 + $0x850] sm:$0xff]
        %v674 = vld [vmem:[#allocation2 + $0x858] sm:$0xff]
        %v675 = vld [vmem:[#allocation2 + $0x860] sm:$0xff]
        %v676 = vld [vmem:[#allocation2 + $0x868] sm:$0xff]
        %v677 = vld [vmem:[#allocation2 + $0x870] sm:$0xff]
        %v678 = vld [vmem:[#allocation2 + $0x878] sm:$0xff]
        %v679 = vld [vmem:[#allocation2 + $0x880] sm:$0xff]
        %v680 = vld [vmem:[#allocation2 + $0x888] sm:$0xff]
        %v681 = vld [vmem:[#allocation2 + $0x890] sm:$0xff]
        %v682 = vld [vmem:[#allocation2 + $0x898] sm:$0xff]
        %v683 = vld [vmem:[#allocation2 + $0x8a0] sm:$0xff]
        %v684 = vld [vmem:[#allocation2 + $0x8a8] sm:$0xff]
        %v685 = vld [vmem:[#allocation2 + $0x8b0] sm:$0xff]
        %v686 = vld [vmem:[#allocation2 + $0x8b8] sm:$0xff]
        %v687 = vld [vmem:[#allocation2 + $0x8c0] sm:$0xff]
        %v688 = vld [vmem:[#allocation2 + $0x8c8] sm:$0xff]
        %v689 = vld [vmem:[#allocation2 + $0x8d0] sm:$0xff]
        %v690 = vld [vmem:[#allocation2 + $0x8d8] sm:$0xff]
        %v691 = vld [vmem:[#allocation2 + $0x8e0] sm:$0xff]
        %v692 = vld [vmem:[#allocation2 + $0x8e8] sm:$0xff]
        %v693 = vld [vmem:[#allocation2 + $0x8f0] sm:$0xff]
        %v694 = vld [vmem:[#allocation2 + $0x8f8] sm:$0xff]
        %v695 = vld [vmem:[#allocation2 + $0x900] sm:$0xff]
        %v696 = vld [vmem:[#allocation2 + $0x908] sm:$0xff]
        %v697 = vld [vmem:[#allocation2 + $0x910] sm:$0xff]
        %v698 = vld [vmem:[#allocation2 + $0x918] sm:$0xff]
        %v699 = vld [vmem:[#allocation2 + $0x920] sm:$0xff]
        %v700 = vld [vmem:[#allocation2 + $0x928] sm:$0xff]
        %v701 = vld [vmem:[#allocation2 + $0x930] sm:$0xff]
        %v702 = vld [vmem:[#allocation2 + $0x938] sm:$0xff]
        %v703 = vld [vmem:[#allocation2 + $0x940] sm:$0xff]
        %v704 = vld [vmem:[#allocation2 + $0x948] sm:$0xff]
        %v705 = vld [vmem:[#allocation2 + $0x950] sm:$0xff]
        %v706 = vld [vmem:[#allocation2 + $0x958] sm:$0xff]
        %v707 = vld [vmem:[#allocation2 + $0x960] sm:$0xff]
        %v708 = vld [vmem:[#allocation2 + $0x968] sm:$0xff]
        %v709 = vld [vmem:[#allocation2 + $0x970] sm:$0xff]
        %v710 = vld [vmem:[#allocation2 + $0x978] sm:$0xff]
        %v711 = vld [vmem:[#allocation2 + $0x980] sm:$0xff]
        %v712 = vld [vmem:[#allocation2 + $0x988] sm:$0xff]
        %v713 = vld [vmem:[#allocation2 + $0x990] sm:$0xff]
        %v714 = vld [vmem:[#allocation2 + $0x998] sm:$0xff]
        %v715 = vld [vmem:[#allocation2 + $0x9a0] sm:$0xff]
        %v716 = vld [vmem:[#allocation2 + $0x9a8] sm:$0xff]
        %v717 = vld [vmem:[#allocation2 + $0x9b0] sm:$0xff]
        %v718 = vld [vmem:[#allocation2 + $0x9b8] sm:$0xff]
        %v719 = vld [vmem:[#allocation2 + $0x9c0] sm:$0xff]
        %v720 = vld [vmem:[#allocation2 + $0x9c8] sm:$0xff]
        %v721 = vld [vmem:[#allocation2 + $0x9d0] sm:$0xff]
        %v722 = vld [vmem:[#allocation2 + $0x9d8] sm:$0xff]
        %v723 = vld [vmem:[#allocation2 + $0x9e0] sm:$0xff]
        %v724 = vld [vmem:[#allocation2 + $0x9e8] sm:$0xff]
        %v725 = vld [vmem:[#allocation2 + $0x9f0] sm:$0xff]
        %v726 = vld [vmem:[#allocation2 + $0x9f8] sm:$0xff]
        %v727 = vld [vmem:[#allocation2 + $0xa00] sm:$0xff]
        %v728 = vld [vmem:[#allocation2 + $0xa08] sm:$0xff]
        %v729 = vld [vmem:[#allocation2 + $0xa10] sm:$0xff]
        %v730 = vld [vmem:[#allocation2 + $0xa18] sm:$0xff]
        %v731 = vld [vmem:[#allocation2 + $0xa20] sm:$0xff]
        %v732 = vld [vmem:[#allocation2 + $0xa28] sm:$0xff]
        %v733 = vld [vmem:[#allocation2 + $0xa30] sm:$0xff]
        %v734 = vld [vmem:[#allocation2 + $0xa38] sm:$0xff]
        %v735 = vld [vmem:[#allocation2 + $0xa40] sm:$0xff]
        %v736 = vld [vmem:[#allocation2 + $0xa48] sm:$0xff]
        %v737 = vld [vmem:[#allocation2 + $0xa50] sm:$0xff]
        %v738 = vld [vmem:[#allocation2 + $0xa58] sm:$0xff]
        %v739 = vld [vmem:[#allocation2 + $0xa60] sm:$0xff]
        %v740 = vld [vmem:[#allocation2 + $0xa68] sm:$0xff]
        %v741 = vld [vmem:[#allocation2 + $0xa70] sm:$0xff]
        %v742 = vld [vmem:[#allocation2 + $0xa78] sm:$0xff]
        %v743 = vld [vmem:[#allocation2 + $0xa80] sm:$0xff]
        %v744 = vld [vmem:[#allocation2 + $0xa88] sm:$0xff]
        %v745 = vld [vmem:[#allocation2 + $0xa90] sm:$0xff]
        %v746 = vld [vmem:[#allocation2 + $0xa98] sm:$0xff]
        %v747 = vld [vmem:[#allocation2 + $0xaa0] sm:$0xff]
        %v748 = vld [vmem:[#allocation2 + $0xaa8] sm:$0xff]
        %v749 = vld [vmem:[#allocation2 + $0xab0] sm:$0xff]
        %v750 = vld [vmem:[#allocation2 + $0xab8] sm:$0xff]
        %v751 = vld [vmem:[#allocation2 + $0xac0] sm:$0xff]
        %v752 = vld [vmem:[#allocation2 + $0xac8] sm:$0xff]
        %v753 = vld [vmem:[#allocation2 + $0xad0] sm:$0xff]
        %v754 = vld [vmem:[#allocation2 + $0xad8] sm:$0xff]
        %v755 = vld [vmem:[#allocation2 + $0xae0] sm:$0xff]
        %v756 = vld [vmem:[#allocation2 + $0xae8] sm:$0xff]
        %v757 = vld [vmem:[#allocation2 + $0xaf0] sm:$0xff]
        %v758 = vld [vmem:[#allocation2 + $0xaf8] sm:$0xff]
        %v759 = vld [vmem:[#allocation2 + $0xb00] sm:$0xff]
        %v760 = vld [vmem:[#allocation2 + $0xb08] sm:$0xff]
        %v761 = vld [vmem:[#allocation2 + $0xb10] sm:$0xff]
        %v762 = vld [vmem:[#allocation2 + $0xb18] sm:$0xff]
        %v763 = vld [vmem:[#allocation2 + $0xb20] sm:$0xff]
        %v764 = vld [vmem:[#allocation2 + $0xb28] sm:$0xff]
        %v765 = vld [vmem:[#allocation2 + $0xb30] sm:$0xff]
        %v766 = vld [vmem:[#allocation2 + $0xb38] sm:$0xff]
        %v767 = vld [vmem:[#allocation2 + $0xb40] sm:$0xff]
        %v768 = vld [vmem:[#allocation2 + $0xb48] sm:$0xff]
        %v769 = vld [vmem:[#allocation2 + $0xb50] sm:$0xff]
        %v770 = vld [vmem:[#allocation2 + $0xb58] sm:$0xff]
        %v771 = vld [vmem:[#allocation2 + $0xb60] sm:$0xff]
        %v772 = vld [vmem:[#allocation2 + $0xb68] sm:$0xff]
        %v773 = vld [vmem:[#allocation2 + $0xb70] sm:$0xff]
        %v774 = vld [vmem:[#allocation2 + $0xb78] sm:$0xff]
        %v775 = vld [vmem:[#allocation2 + $0xb80] sm:$0xff]
        %v776 = vld [vmem:[#allocation2 + $0xb88] sm:$0xff]
        %v777 = vld [vmem:[#allocation2 + $0xb90] sm:$0xff]
        %v778 = vld [vmem:[#allocation2 + $0xb98] sm:$0xff]
        %v779 = vld [vmem:[#allocation2 + $0xba0] sm:$0xff]
        %v780 = vld [vmem:[#allocation2 + $0xba8] sm:$0xff]
        %v781 = vld [vmem:[#allocation2 + $0xbb0] sm:$0xff]
        %v782 = vld [vmem:[#allocation2 + $0xbb8] sm:$0xff]
        %v783 = vld [vmem:[#allocation2 + $0xbc0] sm:$0xff]
        %v784 = vld [vmem:[#allocation2 + $0xbc8] sm:$0xff]
        %v785 = vld [vmem:[#allocation2 + $0xbd0] sm:$0xff]
        %v786 = vld [vmem:[#allocation2 + $0xbd8] sm:$0xff]
        %v787 = vld [vmem:[#allocation2 + $0xbe0] sm:$0xff]
        %v788 = vld [vmem:[#allocation2 + $0xbe8] sm:$0xff]
        %v789 = vld [vmem:[#allocation2 + $0xbf0] sm:$0xff]
        %v790 = vld [vmem:[#allocation2 + $0xbf8] sm:$0xff]
        %v791 = vld [vmem:[#allocation2 + $0xc00] sm:$0xff]
        %v792 = vld [vmem:[#allocation2 + $0xc08] sm:$0xff]
        %v793 = vld [vmem:[#allocation2 + $0xc10] sm:$0xff]
        %v794 = vld [vmem:[#allocation2 + $0xc18] sm:$0xff]
        %v795 = vld [vmem:[#allocation2 + $0xc20] sm:$0xff]
        %v796 = vld [vmem:[#allocation2 + $0xc28] sm:$0xff]
        %v797 = vld [vmem:[#allocation2 + $0xc30] sm:$0xff]
        %v798 = vld [vmem:[#allocation2 + $0xc38] sm:$0xff]
        %v799 = vld [vmem:[#allocation2 + $0xc40] sm:$0xff]
        %v800 = vld [vmem:[#allocation2 + $0xc48] sm:$0xff]
        %v801 = vld [vmem:[#allocation2 + $0xc50] sm:$0xff]
        %v802 = vld [vmem:[#allocation2 + $0xc58] sm:$0xff]
        %v803 = vld [vmem:[#allocation2 + $0xc60] sm:$0xff]
        %v804 = vld [vmem:[#allocation2 + $0xc68] sm:$0xff]
        %v805 = vld [vmem:[#allocation2 + $0xc70] sm:$0xff]
        %v806 = vld [vmem:[#allocation2 + $0xc78] sm:$0xff]
        %v807 = vld [vmem:[#allocation2 + $0xc80] sm:$0xff]
        %v808 = vld [vmem:[#allocation2 + $0xc88] sm:$0xff]
        %v809 = vld [vmem:[#allocation2 + $0xc90] sm:$0xff]
        %v810 = vld [vmem:[#allocation2 + $0xc98] sm:$0xff]
        %v811 = vld [vmem:[#allocation2 + $0xca0] sm:$0xff]
        %v812 = vld [vmem:[#allocation2 + $0xca8] sm:$0xff]
        %v813 = vld [vmem:[#allocation2 + $0xcb0] sm:$0xff]
        %v814 = vld [vmem:[#allocation2 + $0xcb8] sm:$0xff]
        %v815 = vld [vmem:[#allocation2 + $0xcc0] sm:$0xff]
        %v816 = vld [vmem:[#allocation2 + $0xcc8] sm:$0xff]
        %v817 = vld [vmem:[#allocation2 + $0xcd0] sm:$0xff]
        %v818 = vld [vmem:[#allocation2 + $0xcd8] sm:$0xff]
        %v819 = vld [vmem:[#allocation2 + $0xce0] sm:$0xff]
        %v820 = vld [vmem:[#allocation2 + $0xce8] sm:$0xff]
        %v821 = vld [vmem:[#allocation2 + $0xcf0] sm:$0xff]
        %v822 = vld [vmem:[#allocation2 + $0xcf8] sm:$0xff]
        %v823 = vld [vmem:[#allocation2 + $0xd00] sm:$0xff]
        %v824 = vld [vmem:[#allocation2 + $0xd08] sm:$0xff]
        %v825 = vld [vmem:[#allocation2 + $0xd10] sm:$0xff]
        %v826 = vld [vmem:[#allocation2 + $0xd18] sm:$0xff]
        %v827 = vld [vmem:[#allocation2 + $0xd20] sm:$0xff]
        %v828 = vld [vmem:[#allocation2 + $0xd28] sm:$0xff]
        %v829 = vld [vmem:[#allocation2 + $0xd30] sm:$0xff]
        %v830 = vld [vmem:[#allocation2 + $0xd38] sm:$0xff]
        %v831 = vld [vmem:[#allocation2 + $0xd40] sm:$0xff]
        %v832 = vld [vmem:[#allocation2 + $0xd48] sm:$0xff]
        %v833 = vld [vmem:[#allocation2 + $0xd50] sm:$0xff]
        %v834 = vld [vmem:[#allocation2 + $0xd58] sm:$0xff]
        %v835 = vld [vmem:[#allocation2 + $0xd60] sm:$0xff]
        %v836 = vld [vmem:[#allocation2 + $0xd68] sm:$0xff]
        %v837 = vld [vmem:[#allocation2 + $0xd70] sm:$0xff]
        %v838 = vld [vmem:[#allocation2 + $0xd78] sm:$0xff]
        %v839 = vld [vmem:[#allocation2 + $0xd80] sm:$0xff]
        %v840 = vld [vmem:[#allocation2 + $0xd88] sm:$0xff]
        %v841 = vld [vmem:[#allocation2 + $0xd90] sm:$0xff]
        %v842 = vld [vmem:[#allocation2 + $0xd98] sm:$0xff]
        %v843 = vld [vmem:[#allocation2 + $0xda0] sm:$0xff]
        %v844 = vld [vmem:[#allocation2 + $0xda8] sm:$0xff]
        %v845 = vld [vmem:[#allocation2 + $0xdb0] sm:$0xff]
        %v846 = vld [vmem:[#allocation2 + $0xdb8] sm:$0xff]
        %v847 = vld [vmem:[#allocation2 + $0xdc0] sm:$0xff]
        %v848 = vld [vmem:[#allocation2 + $0xdc8] sm:$0xff]
        %v849 = vld [vmem:[#allocation2 + $0xdd0] sm:$0xff]
        %v850 = vld [vmem:[#allocation2 + $0xdd8] sm:$0xff]
        %v851 = vld [vmem:[#allocation2 + $0xde0] sm:$0xff]
        %v852 = vld [vmem:[#allocation2 + $0xde8] sm:$0xff]
        %v853 = vld [vmem:[#allocation2 + $0xdf0] sm:$0xff]
        %v854 = vld [vmem:[#allocation2 + $0xdf8] sm:$0xff]
        %v855 = vld [vmem:[#allocation4] sm:$0xf]
        %v857 = vperm.slane %v855, 0
        %v858 = vperm.slane %v855, 1
        %v859 = vperm.slane %v855, 2
        %v860 = vperm.slane %v855, 3
        %865 = vmatpush.msra.mxu0 %v467
        %866 = vmatpush.msra.mxu0 %v463
        %867 = vmatpush.msra.mxu0 %v459
        %868 = vmatpush.msra.mxu0 %v455
        %869 = vmatpush.msra.mxu0 %v451
        %870 = vmatpush.msra.mxu0 %v447
        %871 = vmatpush.msra.mxu0 %v443
        %872 = vmatpush.msra.mxu0 %v439
        %873 = vmatpush.msra.mxu0 %v435
        %874 = vmatpush.msra.mxu0 %v431
        %875 = vmatpush.msra.mxu0 %v427
        %876 = vmatpush.msra.mxu0 %v423
        %877 = vmatpush.msra.mxu0 %v419
        %878 = vmatpush.msra.mxu0 %v415
        %879 = vmatpush.msra.mxu0 %v411
        %880 = vmatpush.msra.mxu0 %v407
        %881 = vmatmul.f32.gmra.mxu0 %v379
        %v882 = vpop.f32.mrf.mxu0
        %v883 = vadd.f32 %v857, %v882
        %884 = vmatmul.f32.gmra.mxu0 %v386
        %v885 = vpop.f32.mrf.mxu0
        %v886 = vadd.f32 %v857, %v885
        %887 = vmatmul.f32.gmra.mxu0 %v393
        %v888 = vpop.f32.mrf.mxu0
        %v889 = vadd.f32 %v857, %v888
        %890 = vmatmul.f32.gmra.mxu0 %v400
        %v891 = vpop.f32.mrf.mxu0
        %v892 = vadd.f32 %v857, %v891
        %893 = vdwg.mxu0
        %894 = vmatpush.msra.mxu0 %v531
        %895 = vmatpush.msra.mxu0 %v527
        %896 = vmatpush.msra.mxu0 %v523
        %897 = vmatpush.msra.mxu0 %v519
        %898 = vmatpush.msra.mxu0 %v515
        %899 = vmatpush.msra.mxu0 %v511
        %900 = vmatpush.msra.mxu0 %v507
        %901 = vmatpush.msra.mxu0 %v503
        %902 = vmatpush.msra.mxu0 %v499
        %903 = vmatpush.msra.mxu0 %v495
        %904 = vmatpush.msra.mxu0 %v491
        %905 = vmatpush.msra.mxu0 %v487
        %906 = vmatpush.msra.mxu0 %v483
        %907 = vmatpush.msra.mxu0 %v479
        %908 = vmatpush.msra.mxu0 %v475
        %909 = vmatpush.msra.mxu0 %v471
        %910 = vmatmul.f32.gmra.mxu0 %v380
        %v911 = vpop.f32.mrf.mxu0
        %v912 = vadd.f32 %v883, %v911
        %913 = vmatmul.f32.gmra.mxu0 %v387
        %v914 = vpop.f32.mrf.mxu0
        %v915 = vadd.f32 %v886, %v914
        %916 = vmatmul.f32.gmra.mxu0 %v394
        %v917 = vpop.f32.mrf.mxu0
        %v918 = vadd.f32 %v889, %v917
        %919 = vmatmul.f32.gmra.mxu0 %v401
        %v920 = vpop.f32.mrf.mxu0
        %v921 = vadd.f32 %v892, %v920
        %922 = vdwg.mxu0
        %923 = vmatpush.msra.mxu0 %v595
        %924 = vmatpush.msra.mxu0 %v591
        %925 = vmatpush.msra.mxu0 %v587
        %926 = vmatpush.msra.mxu0 %v583
        %927 = vmatpush.msra.mxu0 %v579
        %928 = vmatpush.msra.mxu0 %v575
        %929 = vmatpush.msra.mxu0 %v571
        %930 = vmatpush.msra.mxu0 %v567
        %931 = vmatpush.msra.mxu0 %v563
        %932 = vmatpush.msra.mxu0 %v559
        %933 = vmatpush.msra.mxu0 %v555
        %934 = vmatpush.msra.mxu0 %v551
        %935 = vmatpush.msra.mxu0 %v547
        %936 = vmatpush.msra.mxu0 %v543
        %937 = vmatpush.msra.mxu0 %v539
        %938 = vmatpush.msra.mxu0 %v535
        %939 = vmatmul.f32.gmra.mxu0 %v381
        %v940 = vpop.f32.mrf.mxu0
        %v941 = vadd.f32 %v912, %v940
        %942 = vmatmul.f32.gmra.mxu0 %v388
        %v943 = vpop.f32.mrf.mxu0
        %v944 = vadd.f32 %v915, %v943
        %945 = vmatmul.f32.gmra.mxu0 %v395
        %v946 = vpop.f32.mrf.mxu0
        %v947 = vadd.f32 %v918, %v946
        %948 = vmatmul.f32.gmra.mxu0 %v402
        %v949 = vpop.f32.mrf.mxu0
        %v950 = vadd.f32 %v921, %v949
        %951 = vdwg.mxu0
        %952 = vmatpush.msra.mxu0 %v659
        %953 = vmatpush.msra.mxu0 %v655
        %954 = vmatpush.msra.mxu0 %v651
        %955 = vmatpush.msra.mxu0 %v647
        %956 = vmatpush.msra.mxu0 %v643
        %957 = vmatpush.msra.mxu0 %v639
        %958 = vmatpush.msra.mxu0 %v635
        %959 = vmatpush.msra.mxu0 %v631
        %960 = vmatpush.msra.mxu0 %v627
        %961 = vmatpush.msra.mxu0 %v623
        %962 = vmatpush.msra.mxu0 %v619
        %963 = vmatpush.msra.mxu0 %v615
        %964 = vmatpush.msra.mxu0 %v611
        %965 = vmatpush.msra.mxu0 %v607
        %966 = vmatpush.msra.mxu0 %v603
        %967 = vmatpush.msra.mxu0 %v599
        %968 = vmatmul.f32.gmra.mxu0 %v382
        %v969 = vpop.f32.mrf.mxu0
        %v970 = vadd.f32 %v941, %v969
        %971 = vmatmul.f32.gmra.mxu0 %v389
        %v972 = vpop.f32.mrf.mxu0
        %v973 = vadd.f32 %v944, %v972
        %974 = vmatmul.f32.gmra.mxu0 %v396
        %v975 = vpop.f32.mrf.mxu0
        %v976 = vadd.f32 %v947, %v975
        %977 = vmatmul.f32.gmra.mxu0 %v403
        %v978 = vpop.f32.mrf.mxu0
        %v979 = vadd.f32 %v950, %v978
        %980 = vdwg.mxu0
        %981 = vmatpush.msra.mxu0 %v723
        %982 = vmatpush.msra.mxu0 %v719
        %983 = vmatpush.msra.mxu0 %v715
        %984 = vmatpush.msra.mxu0 %v711
        %985 = vmatpush.msra.mxu0 %v707
        %986 = vmatpush.msra.mxu0 %v703
        %987 = vmatpush.msra.mxu0 %v699
        %988 = vmatpush.msra.mxu0 %v695
        %989 = vmatpush.msra.mxu0 %v691
        %990 = vmatpush.msra.mxu0 %v687
        %991 = vmatpush.msra.mxu0 %v683
        %992 = vmatpush.msra.mxu0 %v679
        %993 = vmatpush.msra.mxu0 %v675
        %994 = vmatpush.msra.mxu0 %v671
        %995 = vmatpush.msra.mxu0 %v667
        %996 = vmatpush.msra.mxu0 %v663
        %997 = vmatmul.f32.gmra.mxu0 %v383
        %v998 = vpop.f32.mrf.mxu0
        %v999 = vadd.f32 %v970, %v998
        %1000 = vmatmul.f32.gmra.mxu0 %v390
        %v1001 = vpop.f32.mrf.mxu0
        %v1002 = vadd.f32 %v973, %v1001
        %1003 = vmatmul.f32.gmra.mxu0 %v397
        %v1004 = vpop.f32.mrf.mxu0
        %v1005 = vadd.f32 %v976, %v1004
        %1006 = vmatmul.f32.gmra.mxu0 %v404
        %v1007 = vpop.f32.mrf.mxu0
        %v1008 = vadd.f32 %v979, %v1007
        %1009 = vdwg.mxu0
        %1010 = vmatpush.msra.mxu0 %v787
        %1011 = vmatpush.msra.mxu0 %v783
        %1012 = vmatpush.msra.mxu0 %v779
        %1013 = vmatpush.msra.mxu0 %v775
        %1014 = vmatpush.msra.mxu0 %v771
        %1015 = vmatpush.msra.mxu0 %v767
        %1016 = vmatpush.msra.mxu0 %v763
        %1017 = vmatpush.msra.mxu0 %v759
        %1018 = vmatpush.msra.mxu0 %v755
        %1019 = vmatpush.msra.mxu0 %v751
        %1020 = vmatpush.msra.mxu0 %v747
        %1021 = vmatpush.msra.mxu0 %v743
        %1022 = vmatpush.msra.mxu0 %v739
        %1023 = vmatpush.msra.mxu0 %v735
        %1024 = vmatpush.msra.mxu0 %v731
        %1025 = vmatpush.msra.mxu0 %v727
        %1026 = vmatmul.f32.gmra.mxu0 %v384
        %v1027 = vpop.f32.mrf.mxu0
        %v1028 = vadd.f32 %v999, %v1027
        %1029 = vmatmul.f32.gmra.mxu0 %v391
        %v1030 = vpop.f32.mrf.mxu0
        %v1031 = vadd.f32 %v1002, %v1030
        %1032 = vmatmul.f32.gmra.mxu0 %v398
        %v1033 = vpop.f32.mrf.mxu0
        %v1034 = vadd.f32 %v1005, %v1033
        %1035 = vmatmul.f32.gmra.mxu0 %v405
        %v1036 = vpop.f32.mrf.mxu0
        %v1037 = vadd.f32 %v1008, %v1036
        %1038 = vdwg.mxu0
        %1039 = vmatpush.msra.mxu0 %v851
        %1040 = vmatpush.msra.mxu0 %v847
        %1041 = vmatpush.msra.mxu0 %v843
        %1042 = vmatpush.msra.mxu0 %v839
        %1043 = vmatpush.msra.mxu0 %v835
        %1044 = vmatpush.msra.mxu0 %v831
        %1045 = vmatpush.msra.mxu0 %v827
        %1046 = vmatpush.msra.mxu0 %v823
        %1047 = vmatpush.msra.mxu0 %v819
        %1048 = vmatpush.msra.mxu0 %v815
        %1049 = vmatpush.msra.mxu0 %v811
        %1050 = vmatpush.msra.mxu0 %v807
        %1051 = vmatpush.msra.mxu0 %v803
        %1052 = vmatpush.msra.mxu0 %v799
        %1053 = vmatpush.msra.mxu0 %v795
        %1054 = vmatpush.msra.mxu0 %v791
        %1055 = vmatmul.f32.gmra.mxu0 %v385
        %v1056 = vpop.f32.mrf.mxu0
        %v1057 = vadd.f32 %v1028, %v1056
        %1058 = vmatmul.f32.gmra.mxu0 %v392
        %v1059 = vpop.f32.mrf.mxu0
        %v1060 = vadd.f32 %v1031, %v1059
        %1061 = vmatmul.f32.gmra.mxu0 %v399
        %v1062 = vpop.f32.mrf.mxu0
        %v1063 = vadd.f32 %v1034, %v1062
        %1064 = vmatmul.f32.gmra.mxu0 %v406
        %v1065 = vpop.f32.mrf.mxu0
        %v1066 = vadd.f32 %v1037, %v1065
        %1067 = vdwg.mxu0
        %1068 = vmatpush.msra.mxu0 %v468
        %1069 = vmatpush.msra.mxu0 %v464
        %1070 = vmatpush.msra.mxu0 %v460
        %1071 = vmatpush.msra.mxu0 %v456
        %1072 = vmatpush.msra.mxu0 %v452
        %1073 = vmatpush.msra.mxu0 %v448
        %1074 = vmatpush.msra.mxu0 %v444
        %1075 = vmatpush.msra.mxu0 %v440
        %1076 = vmatpush.msra.mxu0 %v436
        %1077 = vmatpush.msra.mxu0 %v432
        %1078 = vmatpush.msra.mxu0 %v428
        %1079 = vmatpush.msra.mxu0 %v424
        %1080 = vmatpush.msra.mxu0 %v420
        %1081 = vmatpush.msra.mxu0 %v416
        %1082 = vmatpush.msra.mxu0 %v412
        %1083 = vmatpush.msra.mxu0 %v408
        %1084 = vmatmul.f32.gmra.mxu0 %v379
        %v1085 = vpop.f32.mrf.mxu0
        %v1086 = vadd.f32 %v858, %v1085
        %1087 = vmatmul.f32.gmra.mxu0 %v386
        %v1088 = vpop.f32.mrf.mxu0
        %v1089 = vadd.f32 %v858, %v1088
        %1090 = vmatmul.f32.gmra.mxu0 %v393
        %v1091 = vpop.f32.mrf.mxu0
        %v1092 = vadd.f32 %v858, %v1091
        %1093 = vmatmul.f32.gmra.mxu0 %v400
        %v1094 = vpop.f32.mrf.mxu0
        %v1095 = vadd.f32 %v858, %v1094
        %1096 = vdwg.mxu0
        %1097 = vmatpush.msra.mxu0 %v532
        %1098 = vmatpush.msra.mxu0 %v528
        %1099 = vmatpush.msra.mxu0 %v524
        %1100 = vmatpush.msra.mxu0 %v520
        %1101 = vmatpush.msra.mxu0 %v516
        %1102 = vmatpush.msra.mxu0 %v512
        %1103 = vmatpush.msra.mxu0 %v508
        %1104 = vmatpush.msra.mxu0 %v504
        %1105 = vmatpush.msra.mxu0 %v500
        %1106 = vmatpush.msra.mxu0 %v496
        %1107 = vmatpush.msra.mxu0 %v492
        %1108 = vmatpush.msra.mxu0 %v488
        %1109 = vmatpush.msra.mxu0 %v484
        %1110 = vmatpush.msra.mxu0 %v480
        %1111 = vmatpush.msra.mxu0 %v476
        %1112 = vmatpush.msra.mxu0 %v472
        %1113 = vmatmul.f32.gmra.mxu0 %v380
        %v1114 = vpop.f32.mrf.mxu0
        %v1115 = vadd.f32 %v1086, %v1114
        %1116 = vmatmul.f32.gmra.mxu0 %v387
        %v1117 = vpop.f32.mrf.mxu0
        %v1118 = vadd.f32 %v1089, %v1117
        %1119 = vmatmul.f32.gmra.mxu0 %v394
        %v1120 = vpop.f32.mrf.mxu0
        %v1121 = vadd.f32 %v1092, %v1120
        %1122 = vmatmul.f32.gmra.mxu0 %v401
        %v1123 = vpop.f32.mrf.mxu0
        %v1124 = vadd.f32 %v1095, %v1123
        %1125 = vdwg.mxu0
        %1126 = vmatpush.msra.mxu0 %v596
        %1127 = vmatpush.msra.mxu0 %v592
        %1128 = vmatpush.msra.mxu0 %v588
        %1129 = vmatpush.msra.mxu0 %v584
        %1130 = vmatpush.msra.mxu0 %v580
        %1131 = vmatpush.msra.mxu0 %v576
        %1132 = vmatpush.msra.mxu0 %v572
        %1133 = vmatpush.msra.mxu0 %v568
        %1134 = vmatpush.msra.mxu0 %v564
        %1135 = vmatpush.msra.mxu0 %v560
        %1136 = vmatpush.msra.mxu0 %v556
        %1137 = vmatpush.msra.mxu0 %v552
        %1138 = vmatpush.msra.mxu0 %v548
        %1139 = vmatpush.msra.mxu0 %v544
        %1140 = vmatpush.msra.mxu0 %v540
        %1141 = vmatpush.msra.mxu0 %v536
        %1142 = vmatmul.f32.gmra.mxu0 %v381
        %v1143 = vpop.f32.mrf.mxu0
        %v1144 = vadd.f32 %v1115, %v1143
        %1145 = vmatmul.f32.gmra.mxu0 %v388
        %v1146 = vpop.f32.mrf.mxu0
        %v1147 = vadd.f32 %v1118, %v1146
        %1148 = vmatmul.f32.gmra.mxu0 %v395
        %v1149 = vpop.f32.mrf.mxu0
        %v1150 = vadd.f32 %v1121, %v1149
        %1151 = vmatmul.f32.gmra.mxu0 %v402
        %v1152 = vpop.f32.mrf.mxu0
        %v1153 = vadd.f32 %v1124, %v1152
        %1154 = vdwg.mxu0
        %1155 = vmatpush.msra.mxu0 %v660
        %1156 = vmatpush.msra.mxu0 %v656
        %1157 = vmatpush.msra.mxu0 %v652
        %1158 = vmatpush.msra.mxu0 %v648
        %1159 = vmatpush.msra.mxu0 %v644
        %1160 = vmatpush.msra.mxu0 %v640
        %1161 = vmatpush.msra.mxu0 %v636
        %1162 = vmatpush.msra.mxu0 %v632
        %1163 = vmatpush.msra.mxu0 %v628
        %1164 = vmatpush.msra.mxu0 %v624
        %1165 = vmatpush.msra.mxu0 %v620
        %1166 = vmatpush.msra.mxu0 %v616
        %1167 = vmatpush.msra.mxu0 %v612
        %1168 = vmatpush.msra.mxu0 %v608
        %1169 = vmatpush.msra.mxu0 %v604
        %1170 = vmatpush.msra.mxu0 %v600
        %1171 = vmatmul.f32.gmra.mxu0 %v382
        %v1172 = vpop.f32.mrf.mxu0
        %v1173 = vadd.f32 %v1144, %v1172
        %1174 = vmatmul.f32.gmra.mxu0 %v389
        %v1175 = vpop.f32.mrf.mxu0
        %v1176 = vadd.f32 %v1147, %v1175
        %1177 = vmatmul.f32.gmra.mxu0 %v396
        %v1178 = vpop.f32.mrf.mxu0
        %v1179 = vadd.f32 %v1150, %v1178
        %1180 = vmatmul.f32.gmra.mxu0 %v403
        %v1181 = vpop.f32.mrf.mxu0
        %v1182 = vadd.f32 %v1153, %v1181
        %1183 = vdwg.mxu0
        %1184 = vmatpush.msra.mxu0 %v724
        %1185 = vmatpush.msra.mxu0 %v720
        %1186 = vmatpush.msra.mxu0 %v716
        %1187 = vmatpush.msra.mxu0 %v712
        %1188 = vmatpush.msra.mxu0 %v708
        %1189 = vmatpush.msra.mxu0 %v704
        %1190 = vmatpush.msra.mxu0 %v700
        %1191 = vmatpush.msra.mxu0 %v696
        %1192 = vmatpush.msra.mxu0 %v692
        %1193 = vmatpush.msra.mxu0 %v688
        %1194 = vmatpush.msra.mxu0 %v684
        %1195 = vmatpush.msra.mxu0 %v680
        %1196 = vmatpush.msra.mxu0 %v676
        %1197 = vmatpush.msra.mxu0 %v672
        %1198 = vmatpush.msra.mxu0 %v668
        %1199 = vmatpush.msra.mxu0 %v664
        %1200 = vmatmul.f32.gmra.mxu0 %v383
        %v1201 = vpop.f32.mrf.mxu0
        %v1202 = vadd.f32 %v1173, %v1201
        %1203 = vmatmul.f32.gmra.mxu0 %v390
        %v1204 = vpop.f32.mrf.mxu0
        %v1205 = vadd.f32 %v1176, %v1204
        %1206 = vmatmul.f32.gmra.mxu0 %v397
        %v1207 = vpop.f32.mrf.mxu0
        %v1208 = vadd.f32 %v1179, %v1207
        %1209 = vmatmul.f32.gmra.mxu0 %v404
        %v1210 = vpop.f32.mrf.mxu0
        %v1211 = vadd.f32 %v1182, %v1210
        %1212 = vdwg.mxu0
        %1213 = vmatpush.msra.mxu0 %v788
        %1214 = vmatpush.msra.mxu0 %v784
        %1215 = vmatpush.msra.mxu0 %v780
        %1216 = vmatpush.msra.mxu0 %v776
        %1217 = vmatpush.msra.mxu0 %v772
        %1218 = vmatpush.msra.mxu0 %v768
        %1219 = vmatpush.msra.mxu0 %v764
        %1220 = vmatpush.msra.mxu0 %v760
        %1221 = vmatpush.msra.mxu0 %v756
        %1222 = vmatpush.msra.mxu0 %v752
        %1223 = vmatpush.msra.mxu0 %v748
        %1224 = vmatpush.msra.mxu0 %v744
        %1225 = vmatpush.msra.mxu0 %v740
        %1226 = vmatpush.msra.mxu0 %v736
        %1227 = vmatpush.msra.mxu0 %v732
        %1228 = vmatpush.msra.mxu0 %v728
        %1229 = vmatmul.f32.gmra.mxu0 %v384
        %v1230 = vpop.f32.mrf.mxu0
        %v1231 = vadd.f32 %v1202, %v1230
        %1232 = vmatmul.f32.gmra.mxu0 %v391
        %v1233 = vpop.f32.mrf.mxu0
        %v1234 = vadd.f32 %v1205, %v1233
        %1235 = vmatmul.f32.gmra.mxu0 %v398
        %v1236 = vpop.f32.mrf.mxu0
        %v1237 = vadd.f32 %v1208, %v1236
        %1238 = vmatmul.f32.gmra.mxu0 %v405
        %v1239 = vpop.f32.mrf.mxu0
        %v1240 = vadd.f32 %v1211, %v1239
        %1241 = vdwg.mxu0
        %1242 = vmatpush.msra.mxu0 %v852
        %1243 = vmatpush.msra.mxu0 %v848
        %1244 = vmatpush.msra.mxu0 %v844
        %1245 = vmatpush.msra.mxu0 %v840
        %1246 = vmatpush.msra.mxu0 %v836
        %1247 = vmatpush.msra.mxu0 %v832
        %1248 = vmatpush.msra.mxu0 %v828
        %1249 = vmatpush.msra.mxu0 %v824
        %1250 = vmatpush.msra.mxu0 %v820
        %1251 = vmatpush.msra.mxu0 %v816
        %1252 = vmatpush.msra.mxu0 %v812
        %1253 = vmatpush.msra.mxu0 %v808
        %1254 = vmatpush.msra.mxu0 %v804
        %1255 = vmatpush.msra.mxu0 %v800
        %1256 = vmatpush.msra.mxu0 %v796
        %1257 = vmatpush.msra.mxu0 %v792
        %1258 = vmatmul.f32.gmra.mxu0 %v385
        %v1259 = vpop.f32.mrf.mxu0
        %v1260 = vadd.f32 %v1231, %v1259
        %1261 = vmatmul.f32.gmra.mxu0 %v392
        %v1262 = vpop.f32.mrf.mxu0
        %v1263 = vadd.f32 %v1234, %v1262
        %1264 = vmatmul.f32.gmra.mxu0 %v399
        %v1265 = vpop.f32.mrf.mxu0
        %v1266 = vadd.f32 %v1237, %v1265
        %1267 = vmatmul.f32.gmra.mxu0 %v406
        %v1268 = vpop.f32.mrf.mxu0
        %v1269 = vadd.f32 %v1240, %v1268
        %1270 = vdwg.mxu0
        %1271 = vmatpush.msra.mxu0 %v469
        %1272 = vmatpush.msra.mxu0 %v465
        %1273 = vmatpush.msra.mxu0 %v461
        %1274 = vmatpush.msra.mxu0 %v457
        %1275 = vmatpush.msra.mxu0 %v453
        %1276 = vmatpush.msra.mxu0 %v449
        %1277 = vmatpush.msra.mxu0 %v445
        %1278 = vmatpush.msra.mxu0 %v441
        %1279 = vmatpush.msra.mxu0 %v437
        %1280 = vmatpush.msra.mxu0 %v433
        %1281 = vmatpush.msra.mxu0 %v429
        %1282 = vmatpush.msra.mxu0 %v425
        %1283 = vmatpush.msra.mxu0 %v421
        %1284 = vmatpush.msra.mxu0 %v417
        %1285 = vmatpush.msra.mxu0 %v413
        %1286 = vmatpush.msra.mxu0 %v409
        %1287 = vmatmul.f32.gmra.mxu0 %v379
        %v1288 = vpop.f32.mrf.mxu0
        %v1289 = vadd.f32 %v859, %v1288
        %1290 = vmatmul.f32.gmra.mxu0 %v386
        %v1291 = vpop.f32.mrf.mxu0
        %v1292 = vadd.f32 %v859, %v1291
        %1293 = vmatmul.f32.gmra.mxu0 %v393
        %v1294 = vpop.f32.mrf.mxu0
        %v1295 = vadd.f32 %v859, %v1294
        %1296 = vmatmul.f32.gmra.mxu0 %v400
        %v1297 = vpop.f32.mrf.mxu0
        %v1298 = vadd.f32 %v859, %v1297
        %1299 = vdwg.mxu0
        %1300 = vmatpush.msra.mxu0 %v533
        %1301 = vmatpush.msra.mxu0 %v529
        %1302 = vmatpush.msra.mxu0 %v525
        %1303 = vmatpush.msra.mxu0 %v521
        %1304 = vmatpush.msra.mxu0 %v517
        %1305 = vmatpush.msra.mxu0 %v513
        %1306 = vmatpush.msra.mxu0 %v509
        %1307 = vmatpush.msra.mxu0 %v505
        %1308 = vmatpush.msra.mxu0 %v501
        %1309 = vmatpush.msra.mxu0 %v497
        %1310 = vmatpush.msra.mxu0 %v493
        %1311 = vmatpush.msra.mxu0 %v489
        %1312 = vmatpush.msra.mxu0 %v485
        %1313 = vmatpush.msra.mxu0 %v481
        %1314 = vmatpush.msra.mxu0 %v477
        %1315 = vmatpush.msra.mxu0 %v473
        %1316 = vmatmul.f32.gmra.mxu0 %v380
        %v1317 = vpop.f32.mrf.mxu0
        %v1318 = vadd.f32 %v1289, %v1317
        %1319 = vmatmul.f32.gmra.mxu0 %v387
        %v1320 = vpop.f32.mrf.mxu0
        %v1321 = vadd.f32 %v1292, %v1320
        %1322 = vmatmul.f32.gmra.mxu0 %v394
        %v1323 = vpop.f32.mrf.mxu0
        %v1324 = vadd.f32 %v1295, %v1323
        %1325 = vmatmul.f32.gmra.mxu0 %v401
        %v1326 = vpop.f32.mrf.mxu0
        %v1327 = vadd.f32 %v1298, %v1326
        %1328 = vdwg.mxu0
        %1329 = vmatpush.msra.mxu0 %v597
        %1330 = vmatpush.msra.mxu0 %v593
        %1331 = vmatpush.msra.mxu0 %v589
        %1332 = vmatpush.msra.mxu0 %v585
        %1333 = vmatpush.msra.mxu0 %v581
        %1334 = vmatpush.msra.mxu0 %v577
        %1335 = vmatpush.msra.mxu0 %v573
        %1336 = vmatpush.msra.mxu0 %v569
        %1337 = vmatpush.msra.mxu0 %v565
        %1338 = vmatpush.msra.mxu0 %v561
        %1339 = vmatpush.msra.mxu0 %v557
        %1340 = vmatpush.msra.mxu0 %v553
        %1341 = vmatpush.msra.mxu0 %v549
        %1342 = vmatpush.msra.mxu0 %v545
        %1343 = vmatpush.msra.mxu0 %v541
        %1344 = vmatpush.msra.mxu0 %v537
        %1345 = vmatmul.f32.gmra.mxu0 %v381
        %v1346 = vpop.f32.mrf.mxu0
        %v1347 = vadd.f32 %v1318, %v1346
        %1348 = vmatmul.f32.gmra.mxu0 %v388
        %v1349 = vpop.f32.mrf.mxu0
        %v1350 = vadd.f32 %v1321, %v1349
        %1351 = vmatmul.f32.gmra.mxu0 %v395
        %v1352 = vpop.f32.mrf.mxu0
        %v1353 = vadd.f32 %v1324, %v1352
        %1354 = vmatmul.f32.gmra.mxu0 %v402
        %v1355 = vpop.f32.mrf.mxu0
        %v1356 = vadd.f32 %v1327, %v1355
        %1357 = vdwg.mxu0
        %1358 = vmatpush.msra.mxu0 %v661
        %1359 = vmatpush.msra.mxu0 %v657
        %1360 = vmatpush.msra.mxu0 %v653
        %1361 = vmatpush.msra.mxu0 %v649
        %1362 = vmatpush.msra.mxu0 %v645
        %1363 = vmatpush.msra.mxu0 %v641
        %1364 = vmatpush.msra.mxu0 %v637
        %1365 = vmatpush.msra.mxu0 %v633
        %1366 = vmatpush.msra.mxu0 %v629
        %1367 = vmatpush.msra.mxu0 %v625
        %1368 = vmatpush.msra.mxu0 %v621
        %1369 = vmatpush.msra.mxu0 %v617
        %1370 = vmatpush.msra.mxu0 %v613
        %1371 = vmatpush.msra.mxu0 %v609
        %1372 = vmatpush.msra.mxu0 %v605
        %1373 = vmatpush.msra.mxu0 %v601
        %1374 = vmatmul.f32.gmra.mxu0 %v382
        %v1375 = vpop.f32.mrf.mxu0
        %v1376 = vadd.f32 %v1347, %v1375
        %1377 = vmatmul.f32.gmra.mxu0 %v389
        %v1378 = vpop.f32.mrf.mxu0
        %v1379 = vadd.f32 %v1350, %v1378
        %1380 = vmatmul.f32.gmra.mxu0 %v396
        %v1381 = vpop.f32.mrf.mxu0
        %v1382 = vadd.f32 %v1353, %v1381
        %1383 = vmatmul.f32.gmra.mxu0 %v403
        %v1384 = vpop.f32.mrf.mxu0
        %v1385 = vadd.f32 %v1356, %v1384
        %1386 = vdwg.mxu0
        %1387 = vmatpush.msra.mxu0 %v725
        %1388 = vmatpush.msra.mxu0 %v721
        %1389 = vmatpush.msra.mxu0 %v717
        %1390 = vmatpush.msra.mxu0 %v713
        %1391 = vmatpush.msra.mxu0 %v709
        %1392 = vmatpush.msra.mxu0 %v705
        %1393 = vmatpush.msra.mxu0 %v701
        %1394 = vmatpush.msra.mxu0 %v697
        %1395 = vmatpush.msra.mxu0 %v693
        %1396 = vmatpush.msra.mxu0 %v689
        %1397 = vmatpush.msra.mxu0 %v685
        %1398 = vmatpush.msra.mxu0 %v681
        %1399 = vmatpush.msra.mxu0 %v677
        %1400 = vmatpush.msra.mxu0 %v673
        %1401 = vmatpush.msra.mxu0 %v669
        %1402 = vmatpush.msra.mxu0 %v665
        %1403 = vmatmul.f32.gmra.mxu0 %v383
        %v1404 = vpop.f32.mrf.mxu0
        %v1405 = vadd.f32 %v1376, %v1404
        %1406 = vmatmul.f32.gmra.mxu0 %v390
        %v1407 = vpop.f32.mrf.mxu0
        %v1408 = vadd.f32 %v1379, %v1407
        %1409 = vmatmul.f32.gmra.mxu0 %v397
        %v1410 = vpop.f32.mrf.mxu0
        %v1411 = vadd.f32 %v1382, %v1410
        %1412 = vmatmul.f32.gmra.mxu0 %v404
        %v1413 = vpop.f32.mrf.mxu0
        %v1414 = vadd.f32 %v1385, %v1413
        %1415 = vdwg.mxu0
        %1416 = vmatpush.msra.mxu0 %v789
        %1417 = vmatpush.msra.mxu0 %v785
        %1418 = vmatpush.msra.mxu0 %v781
        %1419 = vmatpush.msra.mxu0 %v777
        %1420 = vmatpush.msra.mxu0 %v773
        %1421 = vmatpush.msra.mxu0 %v769
        %1422 = vmatpush.msra.mxu0 %v765
        %1423 = vmatpush.msra.mxu0 %v761
        %1424 = vmatpush.msra.mxu0 %v757
        %1425 = vmatpush.msra.mxu0 %v753
        %1426 = vmatpush.msra.mxu0 %v749
        %1427 = vmatpush.msra.mxu0 %v745
        %1428 = vmatpush.msra.mxu0 %v741
        %1429 = vmatpush.msra.mxu0 %v737
        %1430 = vmatpush.msra.mxu0 %v733
        %1431 = vmatpush.msra.mxu0 %v729
        %1432 = vmatmul.f32.gmra.mxu0 %v384
        %v1433 = vpop.f32.mrf.mxu0
        %v1434 = vadd.f32 %v1405, %v1433
        %1435 = vmatmul.f32.gmra.mxu0 %v391
        %v1436 = vpop.f32.mrf.mxu0
        %v1437 = vadd.f32 %v1408, %v1436
        %1438 = vmatmul.f32.gmra.mxu0 %v398
        %v1439 = vpop.f32.mrf.mxu0
        %v1440 = vadd.f32 %v1411, %v1439
        %1441 = vmatmul.f32.gmra.mxu0 %v405
        %v1442 = vpop.f32.mrf.mxu0
        %v1443 = vadd.f32 %v1414, %v1442
        %1444 = vdwg.mxu0
        %1445 = vmatpush.msra.mxu0 %v853
        %1446 = vmatpush.msra.mxu0 %v849
        %1447 = vmatpush.msra.mxu0 %v845
        %1448 = vmatpush.msra.mxu0 %v841
        %1449 = vmatpush.msra.mxu0 %v837
        %1450 = vmatpush.msra.mxu0 %v833
        %1451 = vmatpush.msra.mxu0 %v829
        %1452 = vmatpush.msra.mxu0 %v825
        %1453 = vmatpush.msra.mxu0 %v821
        %1454 = vmatpush.msra.mxu0 %v817
        %1455 = vmatpush.msra.mxu0 %v813
        %1456 = vmatpush.msra.mxu0 %v809
        %1457 = vmatpush.msra.mxu0 %v805
        %1458 = vmatpush.msra.mxu0 %v801
        %1459 = vmatpush.msra.mxu0 %v797
        %1460 = vmatpush.msra.mxu0 %v793
        %1461 = vmatmul.f32.gmra.mxu0 %v385
        %v1462 = vpop.f32.mrf.mxu0
        %v1463 = vadd.f32 %v1434, %v1462
        %1464 = vmatmul.f32.gmra.mxu0 %v392
        %v1465 = vpop.f32.mrf.mxu0
        %v1466 = vadd.f32 %v1437, %v1465
        %1467 = vmatmul.f32.gmra.mxu0 %v399
        %v1468 = vpop.f32.mrf.mxu0
        %v1469 = vadd.f32 %v1440, %v1468
        %1470 = vmatmul.f32.gmra.mxu0 %v406
        %v1471 = vpop.f32.mrf.mxu0
        %v1472 = vadd.f32 %v1443, %v1471
        %1473 = vdwg.mxu0
        %1474 = vmatpush.msra.mxu0 %v470
        %1475 = vmatpush.msra.mxu0 %v466
        %1476 = vmatpush.msra.mxu0 %v462
        %1477 = vmatpush.msra.mxu0 %v458
        %1478 = vmatpush.msra.mxu0 %v454
        %1479 = vmatpush.msra.mxu0 %v450
        %1480 = vmatpush.msra.mxu0 %v446
        %1481 = vmatpush.msra.mxu0 %v442
        %1482 = vmatpush.msra.mxu0 %v438
        %1483 = vmatpush.msra.mxu0 %v434
        %1484 = vmatpush.msra.mxu0 %v430
        %1485 = vmatpush.msra.mxu0 %v426
        %1486 = vmatpush.msra.mxu0 %v422
        %1487 = vmatpush.msra.mxu0 %v418
        %1488 = vmatpush.msra.mxu0 %v414
        %1489 = vmatpush.msra.mxu0 %v410
        %1490 = vmatmul.f32.gmra.mxu0 %v379
        %v1491 = vpop.f32.mrf.mxu0
        %v1492 = vadd.f32 %v860, %v1491
        %1493 = vmatmul.f32.gmra.mxu0 %v386
        %v1494 = vpop.f32.mrf.mxu0
        %v1495 = vadd.f32 %v860, %v1494
        %1496 = vmatmul.f32.gmra.mxu0 %v393
        %v1497 = vpop.f32.mrf.mxu0
        %v1498 = vadd.f32 %v860, %v1497
        %1499 = vmatmul.f32.gmra.mxu0 %v400
        %v1500 = vpop.f32.mrf.mxu0
        %v1501 = vadd.f32 %v860, %v1500
        %1502 = vdwg.mxu0
        %1503 = vmatpush.msra.mxu0 %v534
        %1504 = vmatpush.msra.mxu0 %v530
        %1505 = vmatpush.msra.mxu0 %v526
        %1506 = vmatpush.msra.mxu0 %v522
        %1507 = vmatpush.msra.mxu0 %v518
        %1508 = vmatpush.msra.mxu0 %v514
        %1509 = vmatpush.msra.mxu0 %v510
        %1510 = vmatpush.msra.mxu0 %v506
        %1511 = vmatpush.msra.mxu0 %v502
        %1512 = vmatpush.msra.mxu0 %v498
        %1513 = vmatpush.msra.mxu0 %v494
        %1514 = vmatpush.msra.mxu0 %v490
        %1515 = vmatpush.msra.mxu0 %v486
        %1516 = vmatpush.msra.mxu0 %v482
        %1517 = vmatpush.msra.mxu0 %v478
        %1518 = vmatpush.msra.mxu0 %v474
        %1519 = vmatmul.f32.gmra.mxu0 %v380
        %v1520 = vpop.f32.mrf.mxu0
        %v1521 = vadd.f32 %v1492, %v1520
        %1522 = vmatmul.f32.gmra.mxu0 %v387
        %v1523 = vpop.f32.mrf.mxu0
        %v1524 = vadd.f32 %v1495, %v1523
        %1525 = vmatmul.f32.gmra.mxu0 %v394
        %v1526 = vpop.f32.mrf.mxu0
        %v1527 = vadd.f32 %v1498, %v1526
        %1528 = vmatmul.f32.gmra.mxu0 %v401
        %v1529 = vpop.f32.mrf.mxu0
        %v1530 = vadd.f32 %v1501, %v1529
        %1531 = vdwg.mxu0
        %1532 = vmatpush.msra.mxu0 %v598
        %1533 = vmatpush.msra.mxu0 %v594
        %1534 = vmatpush.msra.mxu0 %v590
        %1535 = vmatpush.msra.mxu0 %v586
        %1536 = vmatpush.msra.mxu0 %v582
        %1537 = vmatpush.msra.mxu0 %v578
        %1538 = vmatpush.msra.mxu0 %v574
        %1539 = vmatpush.msra.mxu0 %v570
        %1540 = vmatpush.msra.mxu0 %v566
        %1541 = vmatpush.msra.mxu0 %v562
        %1542 = vmatpush.msra.mxu0 %v558
        %1543 = vmatpush.msra.mxu0 %v554
        %1544 = vmatpush.msra.mxu0 %v550
        %1545 = vmatpush.msra.mxu0 %v546
        %1546 = vmatpush.msra.mxu0 %v542
        %1547 = vmatpush.msra.mxu0 %v538
        %1548 = vmatmul.f32.gmra.mxu0 %v381
        %v1549 = vpop.f32.mrf.mxu0
        %v1550 = vadd.f32 %v1521, %v1549
        %1551 = vmatmul.f32.gmra.mxu0 %v388
        %v1552 = vpop.f32.mrf.mxu0
        %v1553 = vadd.f32 %v1524, %v1552
        %1554 = vmatmul.f32.gmra.mxu0 %v395
        %v1555 = vpop.f32.mrf.mxu0
        %v1556 = vadd.f32 %v1527, %v1555
        %1557 = vmatmul.f32.gmra.mxu0 %v402
        %v1558 = vpop.f32.mrf.mxu0
        %v1559 = vadd.f32 %v1530, %v1558
        %1560 = vdwg.mxu0
        %1561 = vmatpush.msra.mxu0 %v662
        %1562 = vmatpush.msra.mxu0 %v658
        %1563 = vmatpush.msra.mxu0 %v654
        %1564 = vmatpush.msra.mxu0 %v650
        %1565 = vmatpush.msra.mxu0 %v646
        %1566 = vmatpush.msra.mxu0 %v642
        %1567 = vmatpush.msra.mxu0 %v638
        %1568 = vmatpush.msra.mxu0 %v634
        %1569 = vmatpush.msra.mxu0 %v630
        %1570 = vmatpush.msra.mxu0 %v626
        %1571 = vmatpush.msra.mxu0 %v622
        %1572 = vmatpush.msra.mxu0 %v618
        %1573 = vmatpush.msra.mxu0 %v614
        %1574 = vmatpush.msra.mxu0 %v610
        %1575 = vmatpush.msra.mxu0 %v606
        %1576 = vmatpush.msra.mxu0 %v602
        %1577 = vmatmul.f32.gmra.mxu0 %v382
        %v1578 = vpop.f32.mrf.mxu0
        %v1579 = vadd.f32 %v1550, %v1578
        %1580 = vmatmul.f32.gmra.mxu0 %v389
        %v1581 = vpop.f32.mrf.mxu0
        %v1582 = vadd.f32 %v1553, %v1581
        %1583 = vmatmul.f32.gmra.mxu0 %v396
        %v1584 = vpop.f32.mrf.mxu0
        %v1585 = vadd.f32 %v1556, %v1584
        %1586 = vmatmul.f32.gmra.mxu0 %v403
        %v1587 = vpop.f32.mrf.mxu0
        %v1588 = vadd.f32 %v1559, %v1587
        %1589 = vdwg.mxu0
        %1590 = vmatpush.msra.mxu0 %v726
        %1591 = vmatpush.msra.mxu0 %v722
        %1592 = vmatpush.msra.mxu0 %v718
        %1593 = vmatpush.msra.mxu0 %v714
        %1594 = vmatpush.msra.mxu0 %v710
        %1595 = vmatpush.msra.mxu0 %v706
        %1596 = vmatpush.msra.mxu0 %v702
        %1597 = vmatpush.msra.mxu0 %v698
        %1598 = vmatpush.msra.mxu0 %v694
        %1599 = vmatpush.msra.mxu0 %v690
        %1600 = vmatpush.msra.mxu0 %v686
        %1601 = vmatpush.msra.mxu0 %v682
        %1602 = vmatpush.msra.mxu0 %v678
        %1603 = vmatpush.msra.mxu0 %v674
        %1604 = vmatpush.msra.mxu0 %v670
        %1605 = vmatpush.msra.mxu0 %v666
        %1606 = vmatmul.f32.gmra.mxu0 %v383
        %v1607 = vpop.f32.mrf.mxu0
        %v1608 = vadd.f32 %v1579, %v1607
        %1609 = vmatmul.f32.gmra.mxu0 %v390
        %v1610 = vpop.f32.mrf.mxu0
        %v1611 = vadd.f32 %v1582, %v1610
        %1612 = vmatmul.f32.gmra.mxu0 %v397
        %v1613 = vpop.f32.mrf.mxu0
        %v1614 = vadd.f32 %v1585, %v1613
        %1615 = vmatmul.f32.gmra.mxu0 %v404
        %v1616 = vpop.f32.mrf.mxu0
        %v1617 = vadd.f32 %v1588, %v1616
        %1618 = vdwg.mxu0
        %1619 = vmatpush.msra.mxu0 %v790
        %1620 = vmatpush.msra.mxu0 %v786
        %1621 = vmatpush.msra.mxu0 %v782
        %1622 = vmatpush.msra.mxu0 %v778
        %1623 = vmatpush.msra.mxu0 %v774
        %1624 = vmatpush.msra.mxu0 %v770
        %1625 = vmatpush.msra.mxu0 %v766
        %1626 = vmatpush.msra.mxu0 %v762
        %1627 = vmatpush.msra.mxu0 %v758
        %1628 = vmatpush.msra.mxu0 %v754
        %1629 = vmatpush.msra.mxu0 %v750
        %1630 = vmatpush.msra.mxu0 %v746
        %1631 = vmatpush.msra.mxu0 %v742
        %1632 = vmatpush.msra.mxu0 %v738
        %1633 = vmatpush.msra.mxu0 %v734
        %1634 = vmatpush.msra.mxu0 %v730
        %1635 = vmatmul.f32.gmra.mxu0 %v384
        %v1636 = vpop.f32.mrf.mxu0
        %v1637 = vadd.f32 %v1608, %v1636
        %1638 = vmatmul.f32.gmra.mxu0 %v391
        %v1639 = vpop.f32.mrf.mxu0
        %v1640 = vadd.f32 %v1611, %v1639
        %1641 = vmatmul.f32.gmra.mxu0 %v398
        %v1642 = vpop.f32.mrf.mxu0
        %v1643 = vadd.f32 %v1614, %v1642
        %1644 = vmatmul.f32.gmra.mxu0 %v405
        %v1645 = vpop.f32.mrf.mxu0
        %v1646 = vadd.f32 %v1617, %v1645
        %1647 = vdwg.mxu0
        %1648 = vmatpush.msra.mxu0 %v854
        %1649 = vmatpush.msra.mxu0 %v850
        %1650 = vmatpush.msra.mxu0 %v846
        %1651 = vmatpush.msra.mxu0 %v842
        %1652 = vmatpush.msra.mxu0 %v838
        %1653 = vmatpush.msra.mxu0 %v834
        %1654 = vmatpush.msra.mxu0 %v830
        %1655 = vmatpush.msra.mxu0 %v826
        %1656 = vmatpush.msra.mxu0 %v822
        %1657 = vmatpush.msra.mxu0 %v818
        %1658 = vmatpush.msra.mxu0 %v814
        %1659 = vmatpush.msra.mxu0 %v810
        %1660 = vmatpush.msra.mxu0 %v806
        %1661 = vmatpush.msra.mxu0 %v802
        %1662 = vmatpush.msra.mxu0 %v798
        %1663 = vmatpush.msra.mxu0 %v794
        %1664 = vmatmul.f32.gmra.mxu0 %v385
        %v1665 = vpop.f32.mrf.mxu0
        %v1666 = vadd.f32 %v1637, %v1665
        %1667 = vmatmul.f32.gmra.mxu0 %v392
        %v1668 = vpop.f32.mrf.mxu0
        %v1669 = vadd.f32 %v1640, %v1668
        %1670 = vmatmul.f32.gmra.mxu0 %v399
        %v1671 = vpop.f32.mrf.mxu0
        %v1672 = vadd.f32 %v1643, %v1671
        %1673 = vmatmul.f32.gmra.mxu0 %v406
        %v1674 = vpop.f32.mrf.mxu0
        %v1675 = vadd.f32 %v1646, %v1674
        %1676 = vdwg.mxu0
        %v1677 = vmax.f32 %v1057, 0.0
        %v1678 = vmax.f32 %v1260, 0.0
        %v1679 = vmax.f32 %v1463, 0.0
        %v1680 = vmax.f32 %v1666, 0.0
        %v1681 = vmax.f32 %v1060, 0.0
        %v1682 = vmax.f32 %v1263, 0.0
        %v1683 = vmax.f32 %v1466, 0.0
        %v1684 = vmax.f32 %v1669, 0.0
        %v1685 = vmax.f32 %v1063, 0.0
        %v1686 = vmax.f32 %v1266, 0.0
        %v1687 = vmax.f32 %v1469, 0.0
        %v1688 = vmax.f32 %v1672, 0.0
        %v1689 = vmax.f32 %v1066, 0.0
        %v1690 = vmax.f32 %v1269, 0.0
        %v1691 = vmax.f32 %v1472, 0.0
        %v1692 = vmax.f32 %v1675, 0.0
        %v1693 = vld [vmem:[#allocation6] sm:$0xff]
        %v1694 = vld [vmem:[#allocation6 + $0x8] sm:$0xff]
        %v1695 = vld [vmem:[#allocation6 + $0x10] sm:$0xff]
        %v1696 = vld [vmem:[#allocation6 + $0x18] sm:$0xff]
        %v1697 = vld [vmem:[#allocation6 + $0x20] sm:$0xff]
        %v1698 = vld [vmem:[#allocation6 + $0x28] sm:$0xff]
        %v1699 = vld [vmem:[#allocation6 + $0x30] sm:$0xff]
        %v1700 = vld [vmem:[#allocation6 + $0x38] sm:$0xff]
        %v1701 = vld [vmem:[#allocation6 + $0x40] sm:$0xff]
        %v1702 = vld [vmem:[#allocation6 + $0x48] sm:$0xff]
        %v1703 = vld [vmem:[#allocation6 + $0x50] sm:$0xff]
        %v1704 = vld [vmem:[#allocation6 + $0x58] sm:$0xff]
        %v1705 = vld [vmem:[#allocation6 + $0x60] sm:$0xff]
        %v1706 = vld [vmem:[#allocation6 + $0x68] sm:$0xff]
        %v1707 = vld [vmem:[#allocation6 + $0x70] sm:$0xff]
        %v1708 = vld [vmem:[#allocation6 + $0x78] sm:$0xff]
        %v1709 = vld [vmem:[#allocation6 + $0x80] sm:$0xff]
        %v1710 = vld [vmem:[#allocation6 + $0x88] sm:$0xff]
        %v1711 = vld [vmem:[#allocation6 + $0x90] sm:$0xff]
        %v1712 = vld [vmem:[#allocation6 + $0x98] sm:$0xff]
        %v1713 = vld [vmem:[#allocation6 + $0xa0] sm:$0xff]
        %v1714 = vld [vmem:[#allocation6 + $0xa8] sm:$0xff]
        %v1715 = vld [vmem:[#allocation6 + $0xb0] sm:$0xff]
        %v1716 = vld [vmem:[#allocation6 + $0xb8] sm:$0xff]
        %v1717 = vld [vmem:[#allocation6 + $0xc0] sm:$0xff]
        %v1718 = vld [vmem:[#allocation6 + $0xc8] sm:$0xff]
        %v1719 = vld [vmem:[#allocation6 + $0xd0] sm:$0xff]
        %v1720 = vld [vmem:[#allocation6 + $0xd8] sm:$0xff]
        %v1721 = vld [vmem:[#allocation6 + $0xe0] sm:$0xff]
        %v1722 = vld [vmem:[#allocation6 + $0xe8] sm:$0xff]
        %v1723 = vld [vmem:[#allocation6 + $0xf0] sm:$0xff]
        %v1724 = vld [vmem:[#allocation6 + $0xf8] sm:$0xff]
        %v1725 = vld [vmem:[#allocation6 + $0x100] sm:$0xff]
        %v1726 = vld [vmem:[#allocation6 + $0x108] sm:$0xff]
        %v1727 = vld [vmem:[#allocation6 + $0x110] sm:$0xff]
        %v1728 = vld [vmem:[#allocation6 + $0x118] sm:$0xff]
        %v1729 = vld [vmem:[#allocation6 + $0x120] sm:$0xff]
        %v1730 = vld [vmem:[#allocation6 + $0x128] sm:$0xff]
        %v1731 = vld [vmem:[#allocation6 + $0x130] sm:$0xff]
        %v1732 = vld [vmem:[#allocation6 + $0x138] sm:$0xff]
        %v1733 = vld [vmem:[#allocation6 + $0x140] sm:$0xff]
        %v1734 = vld [vmem:[#allocation6 + $0x148] sm:$0xff]
        %v1735 = vld [vmem:[#allocation6 + $0x150] sm:$0xff]
        %v1736 = vld [vmem:[#allocation6 + $0x158] sm:$0xff]
        %v1737 = vld [vmem:[#allocation6 + $0x160] sm:$0xff]
        %v1738 = vld [vmem:[#allocation6 + $0x168] sm:$0xff]
        %v1739 = vld [vmem:[#allocation6 + $0x170] sm:$0xff]
        %v1740 = vld [vmem:[#allocation6 + $0x178] sm:$0xff]
        %v1741 = vld [vmem:[#allocation6 + $0x180] sm:$0xff]
        %v1742 = vld [vmem:[#allocation6 + $0x188] sm:$0xff]
        %v1743 = vld [vmem:[#allocation6 + $0x190] sm:$0xff]
        %v1744 = vld [vmem:[#allocation6 + $0x198] sm:$0xff]
        %v1745 = vld [vmem:[#allocation6 + $0x1a0] sm:$0xff]
        %v1746 = vld [vmem:[#allocation6 + $0x1a8] sm:$0xff]
        %v1747 = vld [vmem:[#allocation6 + $0x1b0] sm:$0xff]
        %v1748 = vld [vmem:[#allocation6 + $0x1b8] sm:$0xff]
        %v1749 = vld [vmem:[#allocation6 + $0x1c0] sm:$0xff]
        %v1750 = vld [vmem:[#allocation6 + $0x1c8] sm:$0xff]
        %v1751 = vld [vmem:[#allocation6 + $0x1d0] sm:$0xff]
        %v1752 = vld [vmem:[#allocation6 + $0x1d8] sm:$0xff]
        %v1753 = vld [vmem:[#allocation6 + $0x1e0] sm:$0xff]
        %v1754 = vld [vmem:[#allocation6 + $0x1e8] sm:$0xff]
        %v1755 = vld [vmem:[#allocation6 + $0x1f0] sm:$0xff]
        %v1756 = vld [vmem:[#allocation6 + $0x1f8] sm:$0xff]
        %v1757 = vld [vmem:[#allocation6 + $0x200] sm:$0xff]
        %v1758 = vld [vmem:[#allocation6 + $0x208] sm:$0xff]
        %v1759 = vld [vmem:[#allocation6 + $0x210] sm:$0xff]
        %v1760 = vld [vmem:[#allocation6 + $0x218] sm:$0xff]
        %v1761 = vld [vmem:[#allocation6 + $0x220] sm:$0xff]
        %v1762 = vld [vmem:[#allocation6 + $0x228] sm:$0xff]
        %v1763 = vld [vmem:[#allocation6 + $0x230] sm:$0xff]
        %v1764 = vld [vmem:[#allocation6 + $0x238] sm:$0xff]
        %v1765 = vld [vmem:[#allocation6 + $0x240] sm:$0xff]
        %v1766 = vld [vmem:[#allocation6 + $0x248] sm:$0xff]
        %v1767 = vld [vmem:[#allocation6 + $0x250] sm:$0xff]
        %v1768 = vld [vmem:[#allocation6 + $0x258] sm:$0xff]
        %v1769 = vld [vmem:[#allocation6 + $0x260] sm:$0xff]
        %v1770 = vld [vmem:[#allocation6 + $0x268] sm:$0xff]
        %v1771 = vld [vmem:[#allocation6 + $0x270] sm:$0xff]
        %v1772 = vld [vmem:[#allocation6 + $0x278] sm:$0xff]
        %v1773 = vld [vmem:[#allocation6 + $0x280] sm:$0xff]
        %v1774 = vld [vmem:[#allocation6 + $0x288] sm:$0xff]
        %v1775 = vld [vmem:[#allocation6 + $0x290] sm:$0xff]
        %v1776 = vld [vmem:[#allocation6 + $0x298] sm:$0xff]
        %v1777 = vld [vmem:[#allocation6 + $0x2a0] sm:$0xff]
        %v1778 = vld [vmem:[#allocation6 + $0x2a8] sm:$0xff]
        %v1779 = vld [vmem:[#allocation6 + $0x2b0] sm:$0xff]
        %v1780 = vld [vmem:[#allocation6 + $0x2b8] sm:$0xff]
        %v1781 = vld [vmem:[#allocation6 + $0x2c0] sm:$0xff]
        %v1782 = vld [vmem:[#allocation6 + $0x2c8] sm:$0xff]
        %v1783 = vld [vmem:[#allocation6 + $0x2d0] sm:$0xff]
        %v1784 = vld [vmem:[#allocation6 + $0x2d8] sm:$0xff]
        %v1785 = vld [vmem:[#allocation6 + $0x2e0] sm:$0xff]
        %v1786 = vld [vmem:[#allocation6 + $0x2e8] sm:$0xff]
        %v1787 = vld [vmem:[#allocation6 + $0x2f0] sm:$0xff]
        %v1788 = vld [vmem:[#allocation6 + $0x2f8] sm:$0xff]
        %v1789 = vld [vmem:[#allocation6 + $0x300] sm:$0xff]
        %v1790 = vld [vmem:[#allocation6 + $0x308] sm:$0xff]
        %v1791 = vld [vmem:[#allocation6 + $0x310] sm:$0xff]
        %v1792 = vld [vmem:[#allocation6 + $0x318] sm:$0xff]
        %v1793 = vld [vmem:[#allocation6 + $0x320] sm:$0xff]
        %v1794 = vld [vmem:[#allocation6 + $0x328] sm:$0xff]
        %v1795 = vld [vmem:[#allocation6 + $0x330] sm:$0xff]
        %v1796 = vld [vmem:[#allocation6 + $0x338] sm:$0xff]
        %v1797 = vld [vmem:[#allocation6 + $0x340] sm:$0xff]
        %v1798 = vld [vmem:[#allocation6 + $0x348] sm:$0xff]
        %v1799 = vld [vmem:[#allocation6 + $0x350] sm:$0xff]
        %v1800 = vld [vmem:[#allocation6 + $0x358] sm:$0xff]
        %v1801 = vld [vmem:[#allocation6 + $0x360] sm:$0xff]
        %v1802 = vld [vmem:[#allocation6 + $0x368] sm:$0xff]
        %v1803 = vld [vmem:[#allocation6 + $0x370] sm:$0xff]
        %v1804 = vld [vmem:[#allocation6 + $0x378] sm:$0xff]
        %v1805 = vld [vmem:[#allocation6 + $0x380] sm:$0xff]
        %v1806 = vld [vmem:[#allocation6 + $0x388] sm:$0xff]
        %v1807 = vld [vmem:[#allocation6 + $0x390] sm:$0xff]
        %v1808 = vld [vmem:[#allocation6 + $0x398] sm:$0xff]
        %v1809 = vld [vmem:[#allocation6 + $0x3a0] sm:$0xff]
        %v1810 = vld [vmem:[#allocation6 + $0x3a8] sm:$0xff]
        %v1811 = vld [vmem:[#allocation6 + $0x3b0] sm:$0xff]
        %v1812 = vld [vmem:[#allocation6 + $0x3b8] sm:$0xff]
        %v1813 = vld [vmem:[#allocation6 + $0x3c0] sm:$0xff]
        %v1814 = vld [vmem:[#allocation6 + $0x3c8] sm:$0xff]
        %v1815 = vld [vmem:[#allocation6 + $0x3d0] sm:$0xff]
        %v1816 = vld [vmem:[#allocation6 + $0x3d8] sm:$0xff]
        %v1817 = vld [vmem:[#allocation6 + $0x3e0] sm:$0xff]
        %v1818 = vld [vmem:[#allocation6 + $0x3e8] sm:$0xff]
        %v1819 = vld [vmem:[#allocation6 + $0x3f0] sm:$0xff]
        %v1820 = vld [vmem:[#allocation6 + $0x3f8] sm:$0xff]
        %v1821 = vld [vmem:[#allocation7] sm:$0x3]
        %v1823 = vperm.slane %v1821, 0
        %v1824 = vperm.slane %v1821, 1
        %1827 = vmatpush.msra.mxu0 %v1723
        %1828 = vmatpush.msra.mxu0 %v1721
        %1829 = vmatpush.msra.mxu0 %v1719
        %1830 = vmatpush.msra.mxu0 %v1717
        %1831 = vmatpush.msra.mxu0 %v1715
        %1832 = vmatpush.msra.mxu0 %v1713
        %1833 = vmatpush.msra.mxu0 %v1711
        %1834 = vmatpush.msra.mxu0 %v1709
        %1835 = vmatpush.msra.mxu0 %v1707
        %1836 = vmatpush.msra.mxu0 %v1705
        %1837 = vmatpush.msra.mxu0 %v1703
        %1838 = vmatpush.msra.mxu0 %v1701
        %1839 = vmatpush.msra.mxu0 %v1699
        %1840 = vmatpush.msra.mxu0 %v1697
        %1841 = vmatpush.msra.mxu0 %v1695
        %1842 = vmatpush.msra.mxu0 %v1693
        %1843 = vmatmul.f32.gmra.mxu0 %v1677
        %v1844 = vpop.f32.mrf.mxu0
        %v1845 = vadd.f32 %v1823, %v1844
        %1846 = vmatmul.f32.gmra.mxu0 %v1681
        %v1847 = vpop.f32.mrf.mxu0
        %v1848 = vadd.f32 %v1823, %v1847
        %1849 = vmatmul.f32.gmra.mxu0 %v1685
        %v1850 = vpop.f32.mrf.mxu0
        %v1851 = vadd.f32 %v1823, %v1850
        %1852 = vmatmul.f32.gmra.mxu0 %v1689
        %v1853 = vpop.f32.mrf.mxu0
        %v1854 = vadd.f32 %v1823, %v1853
        %1855 = vdwg.mxu0
        %1856 = vmatpush.msra.mxu0 %v1755
        %1857 = vmatpush.msra.mxu0 %v1753
        %1858 = vmatpush.msra.mxu0 %v1751
        %1859 = vmatpush.msra.mxu0 %v1749
        %1860 = vmatpush.msra.mxu0 %v1747
        %1861 = vmatpush.msra.mxu0 %v1745
        %1862 = vmatpush.msra.mxu0 %v1743
        %1863 = vmatpush.msra.mxu0 %v1741
        %1864 = vmatpush.msra.mxu0 %v1739
        %1865 = vmatpush.msra.mxu0 %v1737
        %1866 = vmatpush.msra.mxu0 %v1735
        %1867 = vmatpush.msra.mxu0 %v1733
        %1868 = vmatpush.msra.mxu0 %v1731
        %1869 = vmatpush.msra.mxu0 %v1729
        %1870 = vmatpush.msra.mxu0 %v1727
        %1871 = vmatpush.msra.mxu0 %v1725
        %1872 = vmatmul.f32.gmra.mxu0 %v1678
        %v1873 = vpop.f32.mrf.mxu0
        %v1874 = vadd.f32 %v1845, %v1873
        %1875 = vmatmul.f32.gmra.mxu0 %v1682
        %v1876 = vpop.f32.mrf.mxu0
        %v1877 = vadd.f32 %v1848, %v1876
        %1878 = vmatmul.f32.gmra.mxu0 %v1686
        %v1879 = vpop.f32.mrf.mxu0
        %v1880 = vadd.f32 %v1851, %v1879
        %1881 = vmatmul.f32.gmra.mxu0 %v1690
        %v1882 = vpop.f32.mrf.mxu0
        %v1883 = vadd.f32 %v1854, %v1882
        %1884 = vdwg.mxu0
        %1885 = vmatpush.msra.mxu0 %v1787
        %1886 = vmatpush.msra.mxu0 %v1785
        %1887 = vmatpush.msra.mxu0 %v1783
        %1888 = vmatpush.msra.mxu0 %v1781
        %1889 = vmatpush.msra.mxu0 %v1779
        %1890 = vmatpush.msra.mxu0 %v1777
        %1891 = vmatpush.msra.mxu0 %v1775
        %1892 = vmatpush.msra.mxu0 %v1773
        %1893 = vmatpush.msra.mxu0 %v1771
        %1894 = vmatpush.msra.mxu0 %v1769
        %1895 = vmatpush.msra.mxu0 %v1767
        %1896 = vmatpush.msra.mxu0 %v1765
        %1897 = vmatpush.msra.mxu0 %v1763
        %1898 = vmatpush.msra.mxu0 %v1761
        %1899 = vmatpush.msra.mxu0 %v1759
        %1900 = vmatpush.msra.mxu0 %v1757
        %1901 = vmatmul.f32.gmra.mxu0 %v1679
        %v1902 = vpop.f32.mrf.mxu0
        %v1903 = vadd.f32 %v1874, %v1902
        %1904 = vmatmul.f32.gmra.mxu0 %v1683
        %v1905 = vpop.f32.mrf.mxu0
        %v1906 = vadd.f32 %v1877, %v1905
        %1907 = vmatmul.f32.gmra.mxu0 %v1687
        %v1908 = vpop.f32.mrf.mxu0
        %v1909 = vadd.f32 %v1880, %v1908
        %1910 = vmatmul.f32.gmra.mxu0 %v1691
        %v1911 = vpop.f32.mrf.mxu0
        %v1912 = vadd.f32 %v1883, %v1911
        %1913 = vdwg.mxu0
        %1914 = vmatpush.msra.mxu0 %v1819
        %1915 = vmatpush.msra.mxu0 %v1817
        %1916 = vmatpush.msra.mxu0 %v1815
        %1917 = vmatpush.msra.mxu0 %v1813
        %1918 = vmatpush.msra.mxu0 %v1811
        %1919 = vmatpush.msra.mxu0 %v1809
        %1920 = vmatpush.msra.mxu0 %v1807
        %1921 = vmatpush.msra.mxu0 %v1805
        %1922 = vmatpush.msra.mxu0 %v1803
        %1923 = vmatpush.msra.mxu0 %v1801
        %1924 = vmatpush.msra.mxu0 %v1799
        %1925 = vmatpush.msra.mxu0 %v1797
        %1926 = vmatpush.msra.mxu0 %v1795
        %1927 = vmatpush.msra.mxu0 %v1793
        %1928 = vmatpush.msra.mxu0 %v1791
        %1929 = vmatpush.msra.mxu0 %v1789
        %1930 = vmatmul.f32.gmra.mxu0 %v1680
        %v1931 = vpop.f32.mrf.mxu0
        %v1932 = vadd.f32 %v1903, %v1931
        %1933 = vmatmul.f32.gmra.mxu0 %v1684
        %v1934 = vpop.f32.mrf.mxu0
        %v1935 = vadd.f32 %v1906, %v1934
        %1936 = vmatmul.f32.gmra.mxu0 %v1688
        %v1937 = vpop.f32.mrf.mxu0
        %v1938 = vadd.f32 %v1909, %v1937
        %1939 = vmatmul.f32.gmra.mxu0 %v1692
        %v1940 = vpop.f32.mrf.mxu0
        %v1941 = vadd.f32 %v1912, %v1940
        %1942 = vdwg.mxu0
        %1943 = vmatpush.msra.mxu0 %v1724
        %1944 = vmatpush.msra.mxu0 %v1722
        %1945 = vmatpush.msra.mxu0 %v1720
        %1946 = vmatpush.msra.mxu0 %v1718
        %1947 = vmatpush.msra.mxu0 %v1716
        %1948 = vmatpush.msra.mxu0 %v1714
        %1949 = vmatpush.msra.mxu0 %v1712
        %1950 = vmatpush.msra.mxu0 %v1710
        %1951 = vmatpush.msra.mxu0 %v1708
        %1952 = vmatpush.msra.mxu0 %v1706
        %1953 = vmatpush.msra.mxu0 %v1704
        %1954 = vmatpush.msra.mxu0 %v1702
        %1955 = vmatpush.msra.mxu0 %v1700
        %1956 = vmatpush.msra.mxu0 %v1698
        %1957 = vmatpush.msra.mxu0 %v1696
        %1958 = vmatpush.msra.mxu0 %v1694
        %1959 = vmatmul.f32.gmra.mxu0 %v1677
        %v1960 = vpop.f32.mrf.mxu0
        %v1961 = vadd.f32 %v1824, %v1960
        %1962 = vmatmul.f32.gmra.mxu0 %v1681
        %v1963 = vpop.f32.mrf.mxu0
        %v1964 = vadd.f32 %v1824, %v1963
        %1965 = vmatmul.f32.gmra.mxu0 %v1685
        %v1966 = vpop.f32.mrf.mxu0
        %v1967 = vadd.f32 %v1824, %v1966
        %1968 = vmatmul.f32.gmra.mxu0 %v1689
        %v1969 = vpop.f32.mrf.mxu0
        %v1970 = vadd.f32 %v1824, %v1969
        %1971 = vdwg.mxu0
        %1972 = vmatpush.msra.mxu0 %v1756
        %1973 = vmatpush.msra.mxu0 %v1754
        %1974 = vmatpush.msra.mxu0 %v1752
        %1975 = vmatpush.msra.mxu0 %v1750
        %1976 = vmatpush.msra.mxu0 %v1748
        %1977 = vmatpush.msra.mxu0 %v1746
        %1978 = vmatpush.msra.mxu0 %v1744
        %1979 = vmatpush.msra.mxu0 %v1742
        %1980 = vmatpush.msra.mxu0 %v1740
        %1981 = vmatpush.msra.mxu0 %v1738
        %1982 = vmatpush.msra.mxu0 %v1736
        %1983 = vmatpush.msra.mxu0 %v1734
        %1984 = vmatpush.msra.mxu0 %v1732
        %1985 = vmatpush.msra.mxu0 %v1730
        %1986 = vmatpush.msra.mxu0 %v1728
        %1987 = vmatpush.msra.mxu0 %v1726
        %1988 = vmatmul.f32.gmra.mxu0 %v1678
        %v1989 = vpop.f32.mrf.mxu0
        %v1990 = vadd.f32 %v1961, %v1989
        %1991 = vmatmul.f32.gmra.mxu0 %v1682
        %v1992 = vpop.f32.mrf.mxu0
        %v1993 = vadd.f32 %v1964, %v1992
        %1994 = vmatmul.f32.gmra.mxu0 %v1686
        %v1995 = vpop.f32.mrf.mxu0
        %v1996 = vadd.f32 %v1967, %v1995
        %1997 = vmatmul.f32.gmra.mxu0 %v1690
        %v1998 = vpop.f32.mrf.mxu0
        %v1999 = vadd.f32 %v1970, %v1998
        %2000 = vdwg.mxu0
        %2001 = vmatpush.msra.mxu0 %v1788
        %2002 = vmatpush.msra.mxu0 %v1786
        %2003 = vmatpush.msra.mxu0 %v1784
        %2004 = vmatpush.msra.mxu0 %v1782
        %2005 = vmatpush.msra.mxu0 %v1780
        %2006 = vmatpush.msra.mxu0 %v1778
        %2007 = vmatpush.msra.mxu0 %v1776
        %2008 = vmatpush.msra.mxu0 %v1774
        %2009 = vmatpush.msra.mxu0 %v1772
        %2010 = vmatpush.msra.mxu0 %v1770
        %2011 = vmatpush.msra.mxu0 %v1768
        %2012 = vmatpush.msra.mxu0 %v1766
        %2013 = vmatpush.msra.mxu0 %v1764
        %2014 = vmatpush.msra.mxu0 %v1762
        %2015 = vmatpush.msra.mxu0 %v1760
        %2016 = vmatpush.msra.mxu0 %v1758
        %2017 = vmatmul.f32.gmra.mxu0 %v1679
        %v2018 = vpop.f32.mrf.mxu0
        %v2019 = vadd.f32 %v1990, %v2018
        %2020 = vmatmul.f32.gmra.mxu0 %v1683
        %v2021 = vpop.f32.mrf.mxu0
        %v2022 = vadd.f32 %v1993, %v2021
        %2023 = vmatmul.f32.gmra.mxu0 %v1687
        %v2024 = vpop.f32.mrf.mxu0
        %v2025 = vadd.f32 %v1996, %v2024
        %2026 = vmatmul.f32.gmra.mxu0 %v1691
        %v2027 = vpop.f32.mrf.mxu0
        %v2028 = vadd.f32 %v1999, %v2027
        %2029 = vdwg.mxu0
        %2030 = vmatpush.msra.mxu0 %v1820
        %2031 = vmatpush.msra.mxu0 %v1818
        %2032 = vmatpush.msra.mxu0 %v1816
        %2033 = vmatpush.msra.mxu0 %v1814
        %2034 = vmatpush.msra.mxu0 %v1812
        %2035 = vmatpush.msra.mxu0 %v1810
        %2036 = vmatpush.msra.mxu0 %v1808
        %2037 = vmatpush.msra.mxu0 %v1806
        %2038 = vmatpush.msra.mxu0 %v1804
        %2039 = vmatpush.msra.mxu0 %v1802
        %2040 = vmatpush.msra.mxu0 %v1800
        %2041 = vmatpush.msra.mxu0 %v1798
        %2042 = vmatpush.msra.mxu0 %v1796
        %2043 = vmatpush.msra.mxu0 %v1794
        %2044 = vmatpush.msra.mxu0 %v1792
        %2045 = vmatpush.msra.mxu0 %v1790
        %2046 = vmatmul.f32.gmra.mxu0 %v1680
        %v2047 = vpop.f32.mrf.mxu0
        %v2048 = vadd.f32 %v2019, %v2047
        %2049 = vmatmul.f32.gmra.mxu0 %v1684
        %v2050 = vpop.f32.mrf.mxu0
        %v2051 = vadd.f32 %v2022, %v2050
        %2052 = vmatmul.f32.gmra.mxu0 %v1688
        %v2053 = vpop.f32.mrf.mxu0
        %v2054 = vadd.f32 %v2025, %v2053
        %2055 = vmatmul.f32.gmra.mxu0 %v1692
        %v2056 = vpop.f32.mrf.mxu0
        %v2057 = vadd.f32 %v2028, %v2056
        %2058 = vdwg.mxu0
        %v2059 = vmax.f32 %v1932, 0.0
        %v2060 = vmax.f32 %v2048, 0.0
        %v2061 = vmax.f32 %v1935, 0.0
        %v2062 = vmax.f32 %v2051, 0.0
        %v2063 = vmax.f32 %v1938, 0.0
        %v2064 = vmax.f32 %v2054, 0.0
        %v2065 = vmax.f32 %v1941, 0.0
        %v2066 = vmax.f32 %v2057, 0.0
        %v2067 = vld [vmem:[#allocation9] sm:$0xff]
        %v2068 = vld [vmem:[#allocation9 + $0x8] sm:$0xff]
        %v2069 = vld [vmem:[#allocation9 + $0x10] sm:$0xff]
        %v2070 = vld [vmem:[#allocation9 + $0x18] sm:$0xff]
        %v2071 = vld [vmem:[#allocation9 + $0x20] sm:$0xff]
        %v2072 = vld [vmem:[#allocation9 + $0x28] sm:$0xff]
        %v2073 = vld [vmem:[#allocation9 + $0x30] sm:$0xff]
        %v2074 = vld [vmem:[#allocation9 + $0x38] sm:$0xff]
        %v2075 = vld [vmem:[#allocation9 + $0x40] sm:$0xff]
        %v2076 = vld [vmem:[#allocation9 + $0x48] sm:$0xff]
        %v2077 = vld [vmem:[#allocation9 + $0x50] sm:$0xff]
        %v2078 = vld [vmem:[#allocation9 + $0x58] sm:$0xff]
        %v2079 = vld [vmem:[#allocation9 + $0x60] sm:$0xff]
        %v2080 = vld [vmem:[#allocation9 + $0x68] sm:$0xff]
        %v2081 = vld [vmem:[#allocation9 + $0x70] sm:$0xff]
        %v2082 = vld [vmem:[#allocation9 + $0x78] sm:$0xff]
        %v2083 = vld [vmem:[#allocation9 + $0x80] sm:$0xff]
        %v2084 = vld [vmem:[#allocation9 + $0x88] sm:$0xff]
        %v2085 = vld [vmem:[#allocation9 + $0x90] sm:$0xff]
        %v2086 = vld [vmem:[#allocation9 + $0x98] sm:$0xff]
        %v2087 = vld [vmem:[#allocation9 + $0xa0] sm:$0xff]
        %v2088 = vld [vmem:[#allocation9 + $0xa8] sm:$0xff]
        %v2089 = vld [vmem:[#allocation9 + $0xb0] sm:$0xff]
        %v2090 = vld [vmem:[#allocation9 + $0xb8] sm:$0xff]
        %v2091 = vld [vmem:[#allocation9 + $0xc0] sm:$0xff]
        %v2092 = vld [vmem:[#allocation9 + $0xc8] sm:$0xff]
        %v2093 = vld [vmem:[#allocation9 + $0xd0] sm:$0xff]
        %v2094 = vld [vmem:[#allocation9 + $0xd8] sm:$0xff]
        %v2095 = vld [vmem:[#allocation9 + $0xe0] sm:$0xff]
        %v2096 = vld [vmem:[#allocation9 + $0xe8] sm:$0xff]
        %v2097 = vld [vmem:[#allocation9 + $0xf0] sm:$0xff]
        %v2098 = vld [vmem:[#allocation9 + $0xf8] sm:$0xff]
        %v2099 = vld [vmem:[#allocation10] sm:$0x1]
        %v2101 = vperm.slane %v2099, 0
        %2103 = vmatpush.msra.mxu0 %v2082
        %2104 = vmatpush.msra.mxu0 %v2081
        %2105 = vmatpush.msra.mxu0 %v2080
        %2106 = vmatpush.msra.mxu0 %v2079
        %2107 = vmatpush.msra.mxu0 %v2078
        %2108 = vmatpush.msra.mxu0 %v2077
        %2109 = vmatpush.msra.mxu0 %v2076
        %2110 = vmatpush.msra.mxu0 %v2075
        %2111 = vmatpush.msra.mxu0 %v2074
        %2112 = vmatpush.msra.mxu0 %v2073
        %2113 = vmatpush.msra.mxu0 %v2072
        %2114 = vmatpush.msra.mxu0 %v2071
        %2115 = vmatpush.msra.mxu0 %v2070
        %2116 = vmatpush.msra.mxu0 %v2069
        %2117 = vmatpush.msra.mxu0 %v2068
        %2118 = vmatpush.msra.mxu0 %v2067
        %2119 = vmatmul.f32.gmra.mxu0 %v2059
        %v2120 = vpop.f32.mrf.mxu0
        %v2121 = vadd.f32 %v2101, %v2120
        %2122 = vmatmul.f32.gmra.mxu0 %v2061
        %v2123 = vpop.f32.mrf.mxu0
        %v2124 = vadd.f32 %v2101, %v2123
        %2125 = vmatmul.f32.gmra.mxu0 %v2063
        %v2126 = vpop.f32.mrf.mxu0
        %v2127 = vadd.f32 %v2101, %v2126
        %2128 = vmatmul.f32.gmra.mxu0 %v2065
        %v2129 = vpop.f32.mrf.mxu0
        %v2130 = vadd.f32 %v2101, %v2129
        %2131 = vdwg.mxu0
        %2132 = vmatpush.msra.mxu0 %v2098
        %2133 = vmatpush.msra.mxu0 %v2097
        %2134 = vmatpush.msra.mxu0 %v2096
        %2135 = vmatpush.msra.mxu0 %v2095
        %2136 = vmatpush.msra.mxu0 %v2094
        %2137 = vmatpush.msra.mxu0 %v2093
        %2138 = vmatpush.msra.mxu0 %v2092
        %2139 = vmatpush.msra.mxu0 %v2091
        %2140 = vmatpush.msra.mxu0 %v2090
        %2141 = vmatpush.msra.mxu0 %v2089
        %2142 = vmatpush.msra.mxu0 %v2088
        %2143 = vmatpush.msra.mxu0 %v2087
        %2144 = vmatpush.msra.mxu0 %v2086
        %2145 = vmatpush.msra.mxu0 %v2085
        %2146 = vmatpush.msra.mxu0 %v2084
        %2147 = vmatpush.msra.mxu0 %v2083
        %2148 = vmatmul.f32.gmra.mxu0 %v2060
        %v2149 = vpop.f32.mrf.mxu0
        %v2150 = vadd.f32 %v2121, %v2149
        %2151 = vmatmul.f32.gmra.mxu0 %v2062
        %v2152 = vpop.f32.mrf.mxu0
        %v2153 = vadd.f32 %v2124, %v2152
        %2154 = vmatmul.f32.gmra.mxu0 %v2064
        %v2155 = vpop.f32.mrf.mxu0
        %v2156 = vadd.f32 %v2127, %v2155
        %2157 = vmatmul.f32.gmra.mxu0 %v2066
        %v2158 = vpop.f32.mrf.mxu0
        %v2159 = vadd.f32 %v2130, %v2158
        %2160 = vdwg.mxu0
        %2161 = vst [vmem:[%s377] sm:$0xff] %v2150
        %2162 = vst [vmem:[%s377 + $0x8] sm:$0xff] %v2153
        %2163 = vst [vmem:[%s377 + $0x10] sm:$0xff] %v2156
        %2164 = vst [vmem:[%s377 + $0x18] sm:$0xff] %v2159
        %s2165 = smul.u32 4, %s22
        %p2166 = scmp.lt.s32.totalorder %s2165, 7
        %s2167 = scalar_select %p2166, %s2165, 7
        %s2168 = smul.addr %s2167, 8
        %s2169 = scalar_lea.vmem %s7, %s2168
        // Predicated region
        $region73: #{_encoder_forward_impl.1} parent=47 // pred_check
          %p2170 = pneg %p192
        $region74: #{_encoder_forward_impl.1} parent=47 // pred_check_branch
          %2172 = sbr.rel (%p2170) target = $region76
        $region75: #{_encoder_forward_impl.1} parent=47 // pred_region
          %s2173 = smul.u32 4, %s22
        $region76: #{_encoder_forward_impl.1} parent=47 // pred_fallthru
          _
      $region48: #{_encoder_forward_impl.1} parent=5 // pred_fallthru
        _
      %p2174 = scmp.le.s32.totalorder 2, %s17
      // Predicated region
      $region77: #{_encoder_forward_impl.1} parent=5 // pred_check
        %p2175 = pneg %p2174
      $region78: #{_encoder_forward_impl.1} parent=5 // pred_check_branch
        %2177 = sbr.rel (%p2175) target = $region80
      $region79: #{_encoder_forward_impl.1} parent=5 // pred_region
        %s2178 = ssub.s32 %s17, 2
        // Predicated region
        $region81: #{_encoder_forward_impl.1} parent=79 // pred_check
          %p2179 = pneg %p198
        $region82: #{_encoder_forward_impl.1} parent=79 // pred_check_branch
          %2181 = sbr.rel (%p2179) target = $region84
        $region83: #{_encoder_forward_impl.1} parent=79 // pred_region
          %s2182 = smul.u32 4, %s23
          %p2183 = scmp.lt.s32.totalorder %s2182, 7
          %s2184 = scalar_select %p2183, %s2182, 7
          %s2185 = smul.addr %s2184, 8
          %s2186 = scalar_lea.vmem %s7, %s2185
        $region84: #{_encoder_forward_impl.1} parent=79 // pred_fallthru
          _
      $region80: #{_encoder_forward_impl.1} parent=5 // pred_fallthru
        _
    $region6: #{_encoder_forward_impl.1} parent=1 // loop_footer
      %s21 = sadd.s32 1, %s17
    $region7: #{_encoder_forward_impl.1} parent=1 // loop_footer_branch
      %16 = sbr.rel target = $region3
    $region8: #{_encoder_forward_impl.1} parent=1 // loop_exit
      _
    %2187 = vsyncpa [#allocation3], 1
    %s2188 = scalar_lea.sflag [#allocation3], 1
    %2189 = vsyncpa %s2188, 1
    %2190 = vsyncpa [#allocation5], 1
    %2191 = vsyncpa [#allocation8], 1
    %2192 = vsyncpa [#allocation11], 1

</llo_original>
